<compile_context>
chip_gen: v5e
topology: v5e:2x2
jax: 0.10.0
libtpu: 0.0.40
codegen_flags: <defaults>
</compile_context>

<pallas_src>
import jax
import jax.numpy as jnp
from jax import lax
from jax.experimental import pallas as pl
from jax.experimental.pallas import tpu as pltpu


def _round_up(n, m):
    return ((n + m - 1) // m) * m


# --------------------------------------------------------------------------- #
# Kernel
# --------------------------------------------------------------------------- #
def lstm_kernel(x_ref, wih_ref, b_ref, whh_ref, wfc_ref, bfc_ref, out_ref, xw_ref):
    # x_ref  : (T, Bb, D)      matmul_dtype   time-major input
    # wih_ref: (D, 4*Hp)       matmul_dtype   W_ih^T, gate order [i,f,o,g]
    # b_ref  : (1, 4*Hp)       f32            b_ih + b_hh (same gate order)
    # whh_ref: (Hp, 4*Hp)      matmul_dtype   W_hh^T
    # wfc_ref: (Hp, Cp)        matmul_dtype   classifier W^T
    # bfc_ref: (1, Cp)         f32            classifier bias
    # out_ref: (Bb, Cp)        f32            logits (lane-dense, padded)
    # xw_ref : (T, Bb, 4*Hp)   f32  VMEM scratch for the hoisted input projection
    T, Bb, _ = x_ref.shape
    G = wih_ref.shape[1]          # 4 * Hp
    Hp = G // 4

    wih = wih_ref[...]
    b = b_ref[...]
    whh = whh_ref[...]

    # ---- input projection: off the recurrence critical path, into VMEM -------
    def proj(t, carry):
        xw_ref[t] = jnp.dot(x_ref[t], wih,
                            preferred_element_type=jnp.float32) + b
        return carry

    lax.fori_loop(0, T, proj, 0, unroll=True)

    # ---- recurrence: a single dependent matmul per step ----------------------
    def step(t, carry):
        h, c = carry
        gates = xw_ref[t] + jnp.dot(h.astype(whh.dtype), whh,
                                    preferred_element_type=jnp.float32)
        # Gate order [i, f, o, g]: one contiguous sigmoid slab + one tanh slab.
        sig = jax.nn.sigmoid(gates[:, :3 * Hp])
        g_g = jnp.tanh(gates[:, 3 * Hp:])
        i_g = sig[:, 0 * Hp:1 * Hp]
        f_g = sig[:, 1 * Hp:2 * Hp]
        o_g = sig[:, 2 * Hp:3 * Hp]
        c_new = f_g * c + i_g * g_g
        h_new = o_g * jnp.tanh(c_new)
        return (h_new, c_new)

    h0 = jnp.zeros((Bb, Hp), jnp.float32)
    c0 = jnp.zeros((Bb, Hp), jnp.float32)
    h_T, _ = lax.fori_loop(0, T, step, (h0, c0), unroll=True)

    # nn.Dropout(0.3) is identity at inference time.
    # TODO(synk): training-mode dropout (Bernoulli mask via pltpu.prng_*) not emitted.
    # TODO(synk): on v7x, consider latching W_hh in the MXU across steps
    #             (pltpu.matmul_push_rhs / matmul_acc_lhs) if bundle dumps show
    #             the RHS being re-pushed every iteration.
    out_ref[...] = (jnp.dot(h_T.astype(wfc_ref.dtype), wfc_ref[...],
                            preferred_element_type=jnp.float32)
                    + bfc_ref[...]).astype(out_ref.dtype)


# --------------------------------------------------------------------------- #
# One-time weight preparation (hoisted out of the forward path)
# --------------------------------------------------------------------------- #
def prepare_lstm_params(w_ih, w_hh, b_ih, b_hh, fc_w, fc_b,
                        *, matmul_dtype=jnp.bfloat16):
    """Transpose, reorder gate blocks [i,f,g,o] -> [i,f,o,g], pad, and cast.

    Hp = round_up(H, 32) keeps 4*Hp lane (128) aligned; for H = 64 this is a
    no-op (no dead gate lanes). Cp pads the classifier to a lane-dense store.
    Bias tensors stay f32; MXU operands are cast to `matmul_dtype`.
    """
    D = w_ih.shape[1]
    H = w_hh.shape[1]
    C = fc_w.shape[0]
    Hp = _round_up(H, 32)
    Cp = _round_up(C, 128)

    def regate(w_t, rows):
        w4 = w_t.reshape(rows, 4, H)[:, (0, 1, 3, 2), :]          # -> [i, f, o, g]
        return jnp.pad(w4, ((0, 0), (0, 0), (0, Hp - H))).reshape(rows, 4 * Hp)

    wih_t = regate(jnp.transpose(w_ih), D)                                   # (D, 4Hp)
    whh_t = jnp.pad(regate(jnp.transpose(w_hh), H), ((0, Hp - H), (0, 0)))   # (Hp, 4Hp)
    b_p = regate((b_ih + b_hh).reshape(1, 4 * H), 1).astype(jnp.float32)     # (1, 4Hp)
    wfc_t = jnp.pad(jnp.transpose(fc_w), ((0, Hp - H), (0, Cp - C)))         # (Hp, Cp)
    bfc_p = jnp.pad(fc_b.reshape(1, C), ((0, 0), (0, Cp - C))).astype(jnp.float32)

    return {
        "wih_t": wih_t.astype(matmul_dtype),
        "whh_t": whh_t.astype(matmul_dtype),
        "b_p": b_p,
        "wfc_t": wfc_t.astype(matmul_dtype),
        "bfc_p": bfc_p,
        "H": H, "C": C, "Hp": Hp, "Cp": Cp,
        "matmul_dtype": matmul_dtype,
    }


# --------------------------------------------------------------------------- #
# Forward wrapper
# --------------------------------------------------------------------------- #
def lstm_model_forward(x_btd, params, *, block_b=None):
    """x_btd: (B, T, D) float32. Returns logits (B, num_classes) float32."""
    B, T, D = x_btd.shape
    Hp, Cp, C = params["Hp"], params["Cp"], params["C"]
    if block_b is None:
        # Single grid program by default: the recurrence is serial and on
        # single-TC chips (v5e/v6e) batch-splitting the grid only serializes
        # extra T-step loops. On v7x with large B, pass block_b = B // 2 so the
        # two TensorCores each run a batch shard (dimension_semantics parallel).
        block_b = B
    assert B % block_b == 0, "block_b must divide B"

    x_tbd = jnp.transpose(x_btd, (1, 0, 2)).astype(params["matmul_dtype"])   # (T, B, D)

    out_p = pl.pallas_call(
        lstm_kernel,
        out_shape=jax.ShapeDtypeStruct((B, Cp), jnp.float32),
        grid_spec=pltpu.PrefetchScalarGridSpec(
            num_scalar_prefetch=0,
            grid=(B // block_b,),
            in_specs=[
                pl.BlockSpec((T, block_b, D), lambda b: (0, b, 0)),   # x, time-major
                pl.BlockSpec((D, 4 * Hp), lambda b: (0, 0)),          # W_ih^T
                pl.BlockSpec((1, 4 * Hp), lambda b: (0, 0)),          # b_ih + b_hh
                pl.BlockSpec((Hp, 4 * Hp), lambda b: (0, 0)),         # W_hh^T
                pl.BlockSpec((Hp, Cp), lambda b: (0, 0)),             # fc W^T
                pl.BlockSpec((1, Cp), lambda b: (0, 0)),              # fc bias
            ],
            out_specs=pl.BlockSpec((block_b, Cp), lambda b: (b, 0)),
            scratch_shapes=[pltpu.VMEM((T, block_b, 4 * Hp), jnp.float32)],
        ),
        compiler_params=pltpu.CompilerParams(
            dimension_semantics=("parallel",)),
        # NOTE: at H=64 / T=8 everything fits trivially. When scaling H or T on
        # v7x (64 MiB VMEM, 32 MiB default scoped limit): keep bf16 operands,
        # single-buffer the loop-invariant weight specs (pipeline_mode=
        # pl.Buffered(1)), raise vmem_limit_bytes, and time-tile the sequence
        # (VMEM-carried h/c + partial unroll) instead of a full unroll.
    )(x_tbd, params["wih_t"], params["b_p"], params["whh_t"],
      params["wfc_t"], params["bfc_p"])

    return out_p[:, :C]


# --------------------------------------------------------------------------- #
# Pure-JAX reference (matches nn.LSTM(batch_first=True) + Linear)
# --------------------------------------------------------------------------- #
def _reference(x_btd, w_ih, w_hh, b_ih, b_hh, fc_w, fc_b):
    B, T, D = x_btd.shape
    H = w_hh.shape[1]

    def step(carry, x_t):
        h, c = carry
        gates = x_t @ w_ih.T + b_ih + h @ w_hh.T + b_hh
        i, f, g, o = jnp.split(gates, 4, axis=-1)
        i, f, o = jax.nn.sigmoid(i), jax.nn.sigmoid(f), jax.nn.sigmoid(o)
        g = jnp.tanh(g)
        c = f * c + i * g
        h = o * jnp.tanh(c)
        return (h, c), None

    h0 = jnp.zeros((B, H), jnp.float32)
    c0 = jnp.zeros((B, H), jnp.float32)
    (hT, _), _ = lax.scan(step, (h0, c0), jnp.transpose(x_btd, (1, 0, 2)))
    return hT @ fc_w.T + fc_b


if __name__ == "__main__":
    B, T, D_in, H, C = 8, 8, 16, 64, 5

    key = jax.random.PRNGKey(0)
    ks = jax.random.split(key, 7)
    bound = 1.0 / jnp.sqrt(H)

    x = jax.random.normal(ks[0], (B, T, D_in), dtype=jnp.float32)
    w_ih = jax.random.uniform(ks[1], (4 * H, D_in), jnp.float32, -bound, bound)
    w_hh = jax.random.uniform(ks[2], (4 * H, H), jnp.float32, -bound, bound)
    b_ih = jax.random.uniform(ks[3], (4 * H,), jnp.float32, -bound, bound)
    b_hh = jax.random.uniform(ks[4], (4 * H,), jnp.float32, -bound, bound)
    fc_w = jax.random.uniform(ks[5], (C, H), jnp.float32, -bound, bound)
    fc_b = jax.random.uniform(ks[6], (C,), jnp.float32, -bound, bound)

    ref = _reference(x, w_ih, w_hh, b_ih, b_hh, fc_w, fc_b)

    # f32 operand path: strict correctness check.
    p_f32 = prepare_lstm_params(w_ih, w_hh, b_ih, b_hh, fc_w, fc_b,
                                matmul_dtype=jnp.float32)
    out_f32 = jax.block_until_ready(lstm_model_forward(x, p_f32))
    assert out_f32.shape == (B, C)
    assert jnp.allclose(out_f32, ref, atol=1e-4, rtol=1e-4), "f32 mismatch vs reference"

    # Default bf16 MXU-operand path (f32 accumulation / gates / state).
    p_bf16 = prepare_lstm_params(w_ih, w_hh, b_ih, b_hh, fc_w, fc_b)
    out_bf16 = jax.block_until_ready(lstm_model_forward(x, p_bf16))
    assert out_bf16.shape == (B, C)
    assert jnp.all(jnp.isfinite(out_bf16))
    assert jnp.allclose(out_bf16, ref, atol=1e-1, rtol=1e-1), "bf16 mismatch vs reference"

    print("KERNEL_OK")
</pallas_src>

<mosaic_0001>
module attributes {stable_mosaic.version = 11 : i64} {
  func.func @lstm_kernel(%arg0: i32, %arg1: memref<8x8x16xf32, #tpu.memory_space<vmem>>, %arg2: memref<16x256xf32, #tpu.memory_space<vmem>>, %arg3: memref<1x256xf32, #tpu.memory_space<vmem>>, %arg4: memref<64x256xf32, #tpu.memory_space<vmem>>, %arg5: memref<64x128xf32, #tpu.memory_space<vmem>>, %arg6: memref<1x128xf32, #tpu.memory_space<vmem>>, %arg7: memref<8x128xf32, #tpu.memory_space<vmem>>, %arg8: memref<8x8x256xf32, #tpu.memory_space<vmem>>) attributes {dimension_semantics = [#tpu.dimension_semantics<parallel>], iteration_bounds = array<i64: 1>, scalar_prefetch = 0 : i64, scratch_operands = 1 : i64, tpu.core_type = #tpu.core_type<tc>, window_params = [{transform_indices = @transform_0, window_bounds = array<i64: 8, 8, 16>}, {pipeline_mode = #tpu.pipeline_mode<synchronous>, transform_indices = @transform_1, window_bounds = array<i64: 16, 256>}, {pipeline_mode = #tpu.pipeline_mode<synchronous>, transform_indices = @transform_2, window_bounds = array<i64: 1, 256>}, {pipeline_mode = #tpu.pipeline_mode<synchronous>, transform_indices = @transform_3, window_bounds = array<i64: 64, 256>}, {pipeline_mode = #tpu.pipeline_mode<synchronous>, transform_indices = @transform_4, window_bounds = array<i64: 64, 128>}, {pipeline_mode = #tpu.pipeline_mode<synchronous>, transform_indices = @transform_5, window_bounds = array<i64: 1, 128>}, {transform_indices = @transform_6, window_bounds = array<i64: 8, 128>}]} {
    %c0 = arith.constant 0 : index
    %c0_0 = arith.constant 0 : index
    %0 = vector.load %arg2[%c0, %c0_0] : memref<16x256xf32, #tpu.memory_space<vmem>>, vector<16x256xf32>
    %c0_1 = arith.constant 0 : index
    %c0_2 = arith.constant 0 : index
    %1 = vector.load %arg3[%c0_1, %c0_2] : memref<1x256xf32, #tpu.memory_space<vmem>>, vector<1x256xf32>
    %c0_3 = arith.constant 0 : index
    %c0_4 = arith.constant 0 : index
    %2 = vector.load %arg4[%c0_3, %c0_4] : memref<64x256xf32, #tpu.memory_space<vmem>>, vector<64x256xf32>
    %c0_i32 = arith.constant 0 : i32
    %3 = arith.index_cast %c0_i32 : i32 to index
    %c0_5 = arith.constant 0 : index
    %c0_6 = arith.constant 0 : index
    %4 = vector.load %arg1[%3, %c0_5, %c0_6] : memref<8x8x16xf32, #tpu.memory_space<vmem>>, vector<1x8x16xf32>
    %5 = vector.shape_cast %4 : vector<1x8x16xf32> to vector<8x16xf32>
    %cst = arith.constant dense<0.000000e+00> : vector<8x256xf32>
    %6 = tpu.matmul %5, %0, %cst {dimension_numbers = #tpu.dot_dimension_numbers<[1], [0], [0], [1], [0, 0, 1, 1], [], []>} : vector<8x16xf32>, vector<16x256xf32>, vector<8x256xf32> -> vector<8x256xf32>
    %7 = vector.broadcast %1 : vector<1x256xf32> to vector<8x256xf32>
    %8 = arith.addf %6, %7 : vector<8x256xf32>
    %9 = arith.index_cast %c0_i32 : i32 to index
    %c0_7 = arith.constant 0 : index
    %c0_8 = arith.constant 0 : index
    %10 = vector.load %arg8[%9, %c0_7, %c0_8] : memref<8x8x256xf32, #tpu.memory_space<vmem>>, vector<1x8x256xf32>
    %11 = vector.shape_cast %10 : vector<1x8x256xf32> to vector<8x256xf32>
    %12 = vector.shape_cast %8 : vector<8x256xf32> to vector<1x8x256xf32>
    tpu.vector_store %arg8[%9, %c0_7, %c0_8], %12 {strides = array<i32>} : memref<8x8x256xf32, #tpu.memory_space<vmem>>, vector<1x8x256xf32>,
    %c1_i32 = arith.constant 1 : i32
    %13 = arith.index_cast %c1_i32 : i32 to index
    %c0_9 = arith.constant 0 : index
    %c0_10 = arith.constant 0 : index
    %14 = vector.load %arg1[%13, %c0_9, %c0_10] : memref<8x8x16xf32, #tpu.memory_space<vmem>>, vector<1x8x16xf32>
    %15 = vector.shape_cast %14 : vector<1x8x16xf32> to vector<8x16xf32>
    %cst_11 = arith.constant dense<0.000000e+00> : vector<8x256xf32>
    %16 = tpu.matmul %15, %0, %cst_11 {dimension_numbers = #tpu.dot_dimension_numbers<[1], [0], [0], [1], [0, 0, 1, 1], [], []>} : vector<8x16xf32>, vector<16x256xf32>, vector<8x256xf32> -> vector<8x256xf32>
    %17 = vector.broadcast %1 : vector<1x256xf32> to vector<8x256xf32>
    %18 = arith.addf %16, %17 : vector<8x256xf32>
    %19 = arith.index_cast %c1_i32 : i32 to index
    %c0_12 = arith.constant 0 : index
    %c0_13 = arith.constant 0 : index
    %20 = vector.load %arg8[%19, %c0_12, %c0_13] : memref<8x8x256xf32, #tpu.memory_space<vmem>>, vector<1x8x256xf32>
    %21 = vector.shape_cast %20 : vector<1x8x256xf32> to vector<8x256xf32>
    %22 = vector.shape_cast %18 : vector<8x256xf32> to vector<1x8x256xf32>
    tpu.vector_store %arg8[%19, %c0_12, %c0_13], %22 {strides = array<i32>} : memref<8x8x256xf32, #tpu.memory_space<vmem>>, vector<1x8x256xf32>,
    %c2_i32 = arith.constant 2 : i32
    %23 = arith.index_cast %c2_i32 : i32 to index
    %c0_14 = arith.constant 0 : index
    %c0_15 = arith.constant 0 : index
    %24 = vector.load %arg1[%23, %c0_14, %c0_15] : memref<8x8x16xf32, #tpu.memory_space<vmem>>, vector<1x8x16xf32>
    %25 = vector.shape_cast %24 : vector<1x8x16xf32> to vector<8x16xf32>
    %cst_16 = arith.constant dense<0.000000e+00> : vector<8x256xf32>
    %26 = tpu.matmul %25, %0, %cst_16 {dimension_numbers = #tpu.dot_dimension_numbers<[1], [0], [0], [1], [0, 0, 1, 1], [], []>} : vector<8x16xf32>, vector<16x256xf32>, vector<8x256xf32> -> vector<8x256xf32>
    %27 = vector.broadcast %1 : vector<1x256xf32> to vector<8x256xf32>
    %28 = arith.addf %26, %27 : vector<8x256xf32>
    %29 = arith.index_cast %c2_i32 : i32 to index
    %c0_17 = arith.constant 0 : index
    %c0_18 = arith.constant 0 : index
    %30 = vector.load %arg8[%29, %c0_17, %c0_18] : memref<8x8x256xf32, #tpu.memory_space<vmem>>, vector<1x8x256xf32>
    %31 = vector.shape_cast %30 : vector<1x8x256xf32> to vector<8x256xf32>
    %32 = vector.shape_cast %28 : vector<8x256xf32> to vector<1x8x256xf32>
    tpu.vector_store %arg8[%29, %c0_17, %c0_18], %32 {strides = array<i32>} : memref<8x8x256xf32, #tpu.memory_space<vmem>>, vector<1x8x256xf32>,
    %c3_i32 = arith.constant 3 : i32
    %33 = arith.index_cast %c3_i32 : i32 to index
    %c0_19 = arith.constant 0 : index
    %c0_20 = arith.constant 0 : index
    %34 = vector.load %arg1[%33, %c0_19, %c0_20] : memref<8x8x16xf32, #tpu.memory_space<vmem>>, vector<1x8x16xf32>
    %35 = vector.shape_cast %34 : vector<1x8x16xf32> to vector<8x16xf32>
    %cst_21 = arith.constant dense<0.000000e+00> : vector<8x256xf32>
    %36 = tpu.matmul %35, %0, %cst_21 {dimension_numbers = #tpu.dot_dimension_numbers<[1], [0], [0], [1], [0, 0, 1, 1], [], []>} : vector<8x16xf32>, vector<16x256xf32>, vector<8x256xf32> -> vector<8x256xf32>
    %37 = vector.broadcast %1 : vector<1x256xf32> to vector<8x256xf32>
    %38 = arith.addf %36, %37 : vector<8x256xf32>
    %39 = arith.index_cast %c3_i32 : i32 to index
    %c0_22 = arith.constant 0 : index
    %c0_23 = arith.constant 0 : index
    %40 = vector.load %arg8[%39, %c0_22, %c0_23] : memref<8x8x256xf32, #tpu.memory_space<vmem>>, vector<1x8x256xf32>
    %41 = vector.shape_cast %40 : vector<1x8x256xf32> to vector<8x256xf32>
    %42 = vector.shape_cast %38 : vector<8x256xf32> to vector<1x8x256xf32>
    tpu.vector_store %arg8[%39, %c0_22, %c0_23], %42 {strides = array<i32>} : memref<8x8x256xf32, #tpu.memory_space<vmem>>, vector<1x8x256xf32>,
    %c4_i32 = arith.constant 4 : i32
    %43 = arith.index_cast %c4_i32 : i32 to index
    %c0_24 = arith.constant 0 : index
    %c0_25 = arith.constant 0 : index
    %44 = vector.load %arg1[%43, %c0_24, %c0_25] : memref<8x8x16xf32, #tpu.memory_space<vmem>>, vector<1x8x16xf32>
    %45 = vector.shape_cast %44 : vector<1x8x16xf32> to vector<8x16xf32>
    %cst_26 = arith.constant dense<0.000000e+00> : vector<8x256xf32>
    %46 = tpu.matmul %45, %0, %cst_26 {dimension_numbers = #tpu.dot_dimension_numbers<[1], [0], [0], [1], [0, 0, 1, 1], [], []>} : vector<8x16xf32>, vector<16x256xf32>, vector<8x256xf32> -> vector<8x256xf32>
    %47 = vector.broadcast %1 : vector<1x256xf32> to vector<8x256xf32>
    %48 = arith.addf %46, %47 : vector<8x256xf32>
    %49 = arith.index_cast %c4_i32 : i32 to index
    %c0_27 = arith.constant 0 : index
    %c0_28 = arith.constant 0 : index
    %50 = vector.load %arg8[%49, %c0_27, %c0_28] : memref<8x8x256xf32, #tpu.memory_space<vmem>>, vector<1x8x256xf32>
    %51 = vector.shape_cast %50 : vector<1x8x256xf32> to vector<8x256xf32>
    %52 = vector.shape_cast %48 : vector<8x256xf32> to vector<1x8x256xf32>
    tpu.vector_store %arg8[%49, %c0_27, %c0_28], %52 {strides = array<i32>} : memref<8x8x256xf32, #tpu.memory_space<vmem>>, vector<1x8x256xf32>,
    %c5_i32 = arith.constant 5 : i32
    %53 = arith.index_cast %c5_i32 : i32 to index
    %c0_29 = arith.constant 0 : index
    %c0_30 = arith.constant 0 : index
    %54 = vector.load %arg1[%53, %c0_29, %c0_30] : memref<8x8x16xf32, #tpu.memory_space<vmem>>, vector<1x8x16xf32>
    %55 = vector.shape_cast %54 : vector<1x8x16xf32> to vector<8x16xf32>
    %cst_31 = arith.constant dense<0.000000e+00> : vector<8x256xf32>
    %56 = tpu.matmul %55, %0, %cst_31 {dimension_numbers = #tpu.dot_dimension_numbers<[1], [0], [0], [1], [0, 0, 1, 1], [], []>} : vector<8x16xf32>, vector<16x256xf32>, vector<8x256xf32> -> vector<8x256xf32>
    %57 = vector.broadcast %1 : vector<1x256xf32> to vector<8x256xf32>
    %58 = arith.addf %56, %57 : vector<8x256xf32>
    %59 = arith.index_cast %c5_i32 : i32 to index
    %c0_32 = arith.constant 0 : index
    %c0_33 = arith.constant 0 : index
    %60 = vector.load %arg8[%59, %c0_32, %c0_33] : memref<8x8x256xf32, #tpu.memory_space<vmem>>, vector<1x8x256xf32>
    %61 = vector.shape_cast %60 : vector<1x8x256xf32> to vector<8x256xf32>
    %62 = vector.shape_cast %58 : vector<8x256xf32> to vector<1x8x256xf32>
    tpu.vector_store %arg8[%59, %c0_32, %c0_33], %62 {strides = array<i32>} : memref<8x8x256xf32, #tpu.memory_space<vmem>>, vector<1x8x256xf32>,
    %c6_i32 = arith.constant 6 : i32
    %63 = arith.index_cast %c6_i32 : i32 to index
    %c0_34 = arith.constant 0 : index
    %c0_35 = arith.constant 0 : index
    %64 = vector.load %arg1[%63, %c0_34, %c0_35] : memref<8x8x16xf32, #tpu.memory_space<vmem>>, vector<1x8x16xf32>
    %65 = vector.shape_cast %64 : vector<1x8x16xf32> to vector<8x16xf32>
    %cst_36 = arith.constant dense<0.000000e+00> : vector<8x256xf32>
    %66 = tpu.matmul %65, %0, %cst_36 {dimension_numbers = #tpu.dot_dimension_numbers<[1], [0], [0], [1], [0, 0, 1, 1], [], []>} : vector<8x16xf32>, vector<16x256xf32>, vector<8x256xf32> -> vector<8x256xf32>
    %67 = vector.broadcast %1 : vector<1x256xf32> to vector<8x256xf32>
    %68 = arith.addf %66, %67 : vector<8x256xf32>
    %69 = arith.index_cast %c6_i32 : i32 to index
    %c0_37 = arith.constant 0 : index
    %c0_38 = arith.constant 0 : index
    %70 = vector.load %arg8[%69, %c0_37, %c0_38] : memref<8x8x256xf32, #tpu.memory_space<vmem>>, vector<1x8x256xf32>
    %71 = vector.shape_cast %70 : vector<1x8x256xf32> to vector<8x256xf32>
    %72 = vector.shape_cast %68 : vector<8x256xf32> to vector<1x8x256xf32>
    tpu.vector_store %arg8[%69, %c0_37, %c0_38], %72 {strides = array<i32>} : memref<8x8x256xf32, #tpu.memory_space<vmem>>, vector<1x8x256xf32>,
    %c7_i32 = arith.constant 7 : i32
    %73 = arith.index_cast %c7_i32 : i32 to index
    %c0_39 = arith.constant 0 : index
    %c0_40 = arith.constant 0 : index
    %74 = vector.load %arg1[%73, %c0_39, %c0_40] : memref<8x8x16xf32, #tpu.memory_space<vmem>>, vector<1x8x16xf32>
    %75 = vector.shape_cast %74 : vector<1x8x16xf32> to vector<8x16xf32>
    %cst_41 = arith.constant dense<0.000000e+00> : vector<8x256xf32>
    %76 = tpu.matmul %75, %0, %cst_41 {dimension_numbers = #tpu.dot_dimension_numbers<[1], [0], [0], [1], [0, 0, 1, 1], [], []>} : vector<8x16xf32>, vector<16x256xf32>, vector<8x256xf32> -> vector<8x256xf32>
    %77 = vector.broadcast %1 : vector<1x256xf32> to vector<8x256xf32>
    %78 = arith.addf %76, %77 : vector<8x256xf32>
    %79 = arith.index_cast %c7_i32 : i32 to index
    %c0_42 = arith.constant 0 : index
    %c0_43 = arith.constant 0 : index
    %80 = vector.load %arg8[%79, %c0_42, %c0_43] : memref<8x8x256xf32, #tpu.memory_space<vmem>>, vector<1x8x256xf32>
    %81 = vector.shape_cast %80 : vector<1x8x256xf32> to vector<8x256xf32>
    %82 = vector.shape_cast %78 : vector<8x256xf32> to vector<1x8x256xf32>
    tpu.vector_store %arg8[%79, %c0_42, %c0_43], %82 {strides = array<i32>} : memref<8x8x256xf32, #tpu.memory_space<vmem>>, vector<1x8x256xf32>,
    %c8_i32 = arith.constant 8 : i32
    %cst_44 = arith.constant 0.000000e+00 : f32
    %83 = vector.broadcast %cst_44 : f32 to vector<8x64xf32>
    %cst_45 = arith.constant 0.000000e+00 : f32
    %84 = vector.broadcast %cst_45 : f32 to vector<8x64xf32>
    %c0_i32_46 = arith.constant 0 : i32
    %85 = arith.index_cast %c0_i32_46 : i32 to index
    %c0_47 = arith.constant 0 : index
    %c0_48 = arith.constant 0 : index
    %86 = vector.load %arg8[%85, %c0_47, %c0_48] : memref<8x8x256xf32, #tpu.memory_space<vmem>>, vector<1x8x256xf32>
    %87 = vector.shape_cast %86 : vector<1x8x256xf32> to vector<8x256xf32>
    %cst_49 = arith.constant dense<0.000000e+00> : vector<8x256xf32>
    %88 = tpu.matmul %83, %2, %cst_49 {dimension_numbers = #tpu.dot_dimension_numbers<[1], [0], [0], [1], [0, 0, 1, 1], [], []>} : vector<8x64xf32>, vector<64x256xf32>, vector<8x256xf32> -> vector<8x256xf32>
    %89 = arith.addf %87, %88 : vector<8x256xf32>
    %90 = vector.extract_strided_slice %89 {offsets = [0, 0], sizes = [8, 192], strides = [1, 1]} : vector<8x256xf32> to vector<8x192xf32>
    %91 = arith.negf %90 : vector<8x192xf32>
    %92 = math.exp %91 : vector<8x192xf32>
    %cst_50 = arith.constant 1.000000e+00 : f32
    %93 = vector.broadcast %cst_50 : f32 to vector<8x192xf32>
    %94 = arith.addf %93, %92 : vector<8x192xf32>
    %95 = arith.divf %93, %94 : vector<8x192xf32>
    %96 = vector.extract_strided_slice %89 {offsets = [0, 192], sizes = [8, 64], strides = [1, 1]} : vector<8x256xf32> to vector<8x64xf32>
    %97 = math.tanh %96 : vector<8x64xf32>
    %98 = vector.extract_strided_slice %95 {offsets = [0, 0], sizes = [8, 64], strides = [1, 1]} : vector<8x192xf32> to vector<8x64xf32>
    %99 = vector.extract_strided_slice %95 {offsets = [0, 64], sizes = [8, 64], strides = [1, 1]} : vector<8x192xf32> to vector<8x64xf32>
    %100 = vector.extract_strided_slice %95 {offsets = [0, 128], sizes = [8, 64], strides = [1, 1]} : vector<8x192xf32> to vector<8x64xf32>
    %101 = arith.mulf %99, %84 : vector<8x64xf32>
    %102 = arith.mulf %98, %97 : vector<8x64xf32>
    %103 = arith.addf %101, %102 : vector<8x64xf32>
    %104 = math.tanh %103 : vector<8x64xf32>
    %105 = arith.mulf %100, %104 : vector<8x64xf32>
    %c1_i32_51 = arith.constant 1 : i32
    %106 = arith.index_cast %c1_i32_51 : i32 to index
    %c0_52 = arith.constant 0 : index
    %c0_53 = arith.constant 0 : index
    %107 = vector.load %arg8[%106, %c0_52, %c0_53] : memref<8x8x256xf32, #tpu.memory_space<vmem>>, vector<1x8x256xf32>
    %108 = vector.shape_cast %107 : vector<1x8x256xf32> to vector<8x256xf32>
    %cst_54 = arith.constant dense<0.000000e+00> : vector<8x256xf32>
    %109 = tpu.matmul %105, %2, %cst_54 {dimension_numbers = #tpu.dot_dimension_numbers<[1], [0], [0], [1], [0, 0, 1, 1], [], []>} : vector<8x64xf32>, vector<64x256xf32>, vector<8x256xf32> -> vector<8x256xf32>
    %110 = arith.addf %108, %109 : vector<8x256xf32>
    %111 = vector.extract_strided_slice %110 {offsets = [0, 0], sizes = [8, 192], strides = [1, 1]} : vector<8x256xf32> to vector<8x192xf32>
    %112 = arith.negf %111 : vector<8x192xf32>
    %113 = math.exp %112 : vector<8x192xf32>
    %cst_55 = arith.constant 1.000000e+00 : f32
    %114 = vector.broadcast %cst_55 : f32 to vector<8x192xf32>
    %115 = arith.addf %114, %113 : vector<8x192xf32>
    %116 = arith.divf %114, %115 : vector<8x192xf32>
    %117 = vector.extract_strided_slice %110 {offsets = [0, 192], sizes = [8, 64], strides = [1, 1]} : vector<8x256xf32> to vector<8x64xf32>
    %118 = math.tanh %117 : vector<8x64xf32>
    %119 = vector.extract_strided_slice %116 {offsets = [0, 0], sizes = [8, 64], strides = [1, 1]} : vector<8x192xf32> to vector<8x64xf32>
    %120 = vector.extract_strided_slice %116 {offsets = [0, 64], sizes = [8, 64], strides = [1, 1]} : vector<8x192xf32> to vector<8x64xf32>
    %121 = vector.extract_strided_slice %116 {offsets = [0, 128], sizes = [8, 64], strides = [1, 1]} : vector<8x192xf32> to vector<8x64xf32>
    %122 = arith.mulf %120, %103 : vector<8x64xf32>
    %123 = arith.mulf %119, %118 : vector<8x64xf32>
    %124 = arith.addf %122, %123 : vector<8x64xf32>
    %125 = math.tanh %124 : vector<8x64xf32>
    %126 = arith.mulf %121, %125 : vector<8x64xf32>
    %c2_i32_56 = arith.constant 2 : i32
    %127 = arith.index_cast %c2_i32_56 : i32 to index
    %c0_57 = arith.constant 0 : index
    %c0_58 = arith.constant 0 : index
    %128 = vector.load %arg8[%127, %c0_57, %c0_58] : memref<8x8x256xf32, #tpu.memory_space<vmem>>, vector<1x8x256xf32>
    %129 = vector.shape_cast %128 : vector<1x8x256xf32> to vector<8x256xf32>
    %cst_59 = arith.constant dense<0.000000e+00> : vector<8x256xf32>
    %130 = tpu.matmul %126, %2, %cst_59 {dimension_numbers = #tpu.dot_dimension_numbers<[1], [0], [0], [1], [0, 0, 1, 1], [], []>} : vector<8x64xf32>, vector<64x256xf32>, vector<8x256xf32> -> vector<8x256xf32>
    %131 = arith.addf %129, %130 : vector<8x256xf32>
    %132 = vector.extract_strided_slice %131 {offsets = [0, 0], sizes = [8, 192], strides = [1, 1]} : vector<8x256xf32> to vector<8x192xf32>
    %133 = arith.negf %132 : vector<8x192xf32>
    %134 = math.exp %133 : vector<8x192xf32>
    %cst_60 = arith.constant 1.000000e+00 : f32
    %135 = vector.broadcast %cst_60 : f32 to vector<8x192xf32>
    %136 = arith.addf %135, %134 : vector<8x192xf32>
    %137 = arith.divf %135, %136 : vector<8x192xf32>
    %138 = vector.extract_strided_slice %131 {offsets = [0, 192], sizes = [8, 64], strides = [1, 1]} : vector<8x256xf32> to vector<8x64xf32>
    %139 = math.tanh %138 : vector<8x64xf32>
    %140 = vector.extract_strided_slice %137 {offsets = [0, 0], sizes = [8, 64], strides = [1, 1]} : vector<8x192xf32> to vector<8x64xf32>
    %141 = vector.extract_strided_slice %137 {offsets = [0, 64], sizes = [8, 64], strides = [1, 1]} : vector<8x192xf32> to vector<8x64xf32>
    %142 = vector.extract_strided_slice %137 {offsets = [0, 128], sizes = [8, 64], strides = [1, 1]} : vector<8x192xf32> to vector<8x64xf32>
    %143 = arith.mulf %141, %124 : vector<8x64xf32>
    %144 = arith.mulf %140, %139 : vector<8x64xf32>
    %145 = arith.addf %143, %144 : vector<8x64xf32>
    %146 = math.tanh %145 : vector<8x64xf32>
    %147 = arith.mulf %142, %146 : vector<8x64xf32>
    %c3_i32_61 = arith.constant 3 : i32
    %148 = arith.index_cast %c3_i32_61 : i32 to index
    %c0_62 = arith.constant 0 : index
    %c0_63 = arith.constant 0 : index
    %149 = vector.load %arg8[%148, %c0_62, %c0_63] : memref<8x8x256xf32, #tpu.memory_space<vmem>>, vector<1x8x256xf32>
    %150 = vector.shape_cast %149 : vector<1x8x256xf32> to vector<8x256xf32>
    %cst_64 = arith.constant dense<0.000000e+00> : vector<8x256xf32>
    %151 = tpu.matmul %147, %2, %cst_64 {dimension_numbers = #tpu.dot_dimension_numbers<[1], [0], [0], [1], [0, 0, 1, 1], [], []>} : vector<8x64xf32>, vector<64x256xf32>, vector<8x256xf32> -> vector<8x256xf32>
    %152 = arith.addf %150, %151 : vector<8x256xf32>
    %153 = vector.extract_strided_slice %152 {offsets = [0, 0], sizes = [8, 192], strides = [1, 1]} : vector<8x256xf32> to vector<8x192xf32>
    %154 = arith.negf %153 : vector<8x192xf32>
    %155 = math.exp %154 : vector<8x192xf32>
    %cst_65 = arith.constant 1.000000e+00 : f32
    %156 = vector.broadcast %cst_65 : f32 to vector<8x192xf32>
    %157 = arith.addf %156, %155 : vector<8x192xf32>
    %158 = arith.divf %156, %157 : vector<8x192xf32>
    %159 = vector.extract_strided_slice %152 {offsets = [0, 192], sizes = [8, 64], strides = [1, 1]} : vector<8x256xf32> to vector<8x64xf32>
    %160 = math.tanh %159 : vector<8x64xf32>
    %161 = vector.extract_strided_slice %158 {offsets = [0, 0], sizes = [8, 64], strides = [1, 1]} : vector<8x192xf32> to vector<8x64xf32>
    %162 = vector.extract_strided_slice %158 {offsets = [0, 64], sizes = [8, 64], strides = [1, 1]} : vector<8x192xf32> to vector<8x64xf32>
    %163 = vector.extract_strided_slice %158 {offsets = [0, 128], sizes = [8, 64], strides = [1, 1]} : vector<8x192xf32> to vector<8x64xf32>
    %164 = arith.mulf %162, %145 : vector<8x64xf32>
    %165 = arith.mulf %161, %160 : vector<8x64xf32>
    %166 = arith.addf %164, %165 : vector<8x64xf32>
    %167 = math.tanh %166 : vector<8x64xf32>
    %168 = arith.mulf %163, %167 : vector<8x64xf32>
    %c4_i32_66 = arith.constant 4 : i32
    %169 = arith.index_cast %c4_i32_66 : i32 to index
    %c0_67 = arith.constant 0 : index
    %c0_68 = arith.constant 0 : index
    %170 = vector.load %arg8[%169, %c0_67, %c0_68] : memref<8x8x256xf32, #tpu.memory_space<vmem>>, vector<1x8x256xf32>
    %171 = vector.shape_cast %170 : vector<1x8x256xf32> to vector<8x256xf32>
    %cst_69 = arith.constant dense<0.000000e+00> : vector<8x256xf32>
    %172 = tpu.matmul %168, %2, %cst_69 {dimension_numbers = #tpu.dot_dimension_numbers<[1], [0], [0], [1], [0, 0, 1, 1], [], []>} : vector<8x64xf32>, vector<64x256xf32>, vector<8x256xf32> -> vector<8x256xf32>
    %173 = arith.addf %171, %172 : vector<8x256xf32>
    %174 = vector.extract_strided_slice %173 {offsets = [0, 0], sizes = [8, 192], strides = [1, 1]} : vector<8x256xf32> to vector<8x192xf32>
    %175 = arith.negf %174 : vector<8x192xf32>
    %176 = math.exp %175 : vector<8x192xf32>
    %cst_70 = arith.constant 1.000000e+00 : f32
    %177 = vector.broadcast %cst_70 : f32 to vector<8x192xf32>
    %178 = arith.addf %177, %176 : vector<8x192xf32>
    %179 = arith.divf %177, %178 : vector<8x192xf32>
    %180 = vector.extract_strided_slice %173 {offsets = [0, 192], sizes = [8, 64], strides = [1, 1]} : vector<8x256xf32> to vector<8x64xf32>
    %181 = math.tanh %180 : vector<8x64xf32>
    %182 = vector.extract_strided_slice %179 {offsets = [0, 0], sizes = [8, 64], strides = [1, 1]} : vector<8x192xf32> to vector<8x64xf32>
    %183 = vector.extract_strided_slice %179 {offsets = [0, 64], sizes = [8, 64], strides = [1, 1]} : vector<8x192xf32> to vector<8x64xf32>
    %184 = vector.extract_strided_slice %179 {offsets = [0, 128], sizes = [8, 64], strides = [1, 1]} : vector<8x192xf32> to vector<8x64xf32>
    %185 = arith.mulf %183, %166 : vector<8x64xf32>
    %186 = arith.mulf %182, %181 : vector<8x64xf32>
    %187 = arith.addf %185, %186 : vector<8x64xf32>
    %188 = math.tanh %187 : vector<8x64xf32>
    %189 = arith.mulf %184, %188 : vector<8x64xf32>
    %c5_i32_71 = arith.constant 5 : i32
    %190 = arith.index_cast %c5_i32_71 : i32 to index
    %c0_72 = arith.constant 0 : index
    %c0_73 = arith.constant 0 : index
    %191 = vector.load %arg8[%190, %c0_72, %c0_73] : memref<8x8x256xf32, #tpu.memory_space<vmem>>, vector<1x8x256xf32>
    %192 = vector.shape_cast %191 : vector<1x8x256xf32> to vector<8x256xf32>
    %cst_74 = arith.constant dense<0.000000e+00> : vector<8x256xf32>
    %193 = tpu.matmul %189, %2, %cst_74 {dimension_numbers = #tpu.dot_dimension_numbers<[1], [0], [0], [1], [0, 0, 1, 1], [], []>} : vector<8x64xf32>, vector<64x256xf32>, vector<8x256xf32> -> vector<8x256xf32>
    %194 = arith.addf %192, %193 : vector<8x256xf32>
    %195 = vector.extract_strided_slice %194 {offsets = [0, 0], sizes = [8, 192], strides = [1, 1]} : vector<8x256xf32> to vector<8x192xf32>
    %196 = arith.negf %195 : vector<8x192xf32>
    %197 = math.exp %196 : vector<8x192xf32>
    %cst_75 = arith.constant 1.000000e+00 : f32
    %198 = vector.broadcast %cst_75 : f32 to vector<8x192xf32>
    %199 = arith.addf %198, %197 : vector<8x192xf32>
    %200 = arith.divf %198, %199 : vector<8x192xf32>
    %201 = vector.extract_strided_slice %194 {offsets = [0, 192], sizes = [8, 64], strides = [1, 1]} : vector<8x256xf32> to vector<8x64xf32>
    %202 = math.tanh %201 : vector<8x64xf32>
    %203 = vector.extract_strided_slice %200 {offsets = [0, 0], sizes = [8, 64], strides = [1, 1]} : vector<8x192xf32> to vector<8x64xf32>
    %204 = vector.extract_strided_slice %200 {offsets = [0, 64], sizes = [8, 64], strides = [1, 1]} : vector<8x192xf32> to vector<8x64xf32>
    %205 = vector.extract_strided_slice %200 {offsets = [0, 128], sizes = [8, 64], strides = [1, 1]} : vector<8x192xf32> to vector<8x64xf32>
    %206 = arith.mulf %204, %187 : vector<8x64xf32>
    %207 = arith.mulf %203, %202 : vector<8x64xf32>
    %208 = arith.addf %206, %207 : vector<8x64xf32>
    %209 = math.tanh %208 : vector<8x64xf32>
    %210 = arith.mulf %205, %209 : vector<8x64xf32>
    %c6_i32_76 = arith.constant 6 : i32
    %211 = arith.index_cast %c6_i32_76 : i32 to index
    %c0_77 = arith.constant 0 : index
    %c0_78 = arith.constant 0 : index
    %212 = vector.load %arg8[%211, %c0_77, %c0_78] : memref<8x8x256xf32, #tpu.memory_space<vmem>>, vector<1x8x256xf32>
    %213 = vector.shape_cast %212 : vector<1x8x256xf32> to vector<8x256xf32>
    %cst_79 = arith.constant dense<0.000000e+00> : vector<8x256xf32>
    %214 = tpu.matmul %210, %2, %cst_79 {dimension_numbers = #tpu.dot_dimension_numbers<[1], [0], [0], [1], [0, 0, 1, 1], [], []>} : vector<8x64xf32>, vector<64x256xf32>, vector<8x256xf32> -> vector<8x256xf32>
    %215 = arith.addf %213, %214 : vector<8x256xf32>
    %216 = vector.extract_strided_slice %215 {offsets = [0, 0], sizes = [8, 192], strides = [1, 1]} : vector<8x256xf32> to vector<8x192xf32>
    %217 = arith.negf %216 : vector<8x192xf32>
    %218 = math.exp %217 : vector<8x192xf32>
    %cst_80 = arith.constant 1.000000e+00 : f32
    %219 = vector.broadcast %cst_80 : f32 to vector<8x192xf32>
    %220 = arith.addf %219, %218 : vector<8x192xf32>
    %221 = arith.divf %219, %220 : vector<8x192xf32>
    %222 = vector.extract_strided_slice %215 {offsets = [0, 192], sizes = [8, 64], strides = [1, 1]} : vector<8x256xf32> to vector<8x64xf32>
    %223 = math.tanh %222 : vector<8x64xf32>
    %224 = vector.extract_strided_slice %221 {offsets = [0, 0], sizes = [8, 64], strides = [1, 1]} : vector<8x192xf32> to vector<8x64xf32>
    %225 = vector.extract_strided_slice %221 {offsets = [0, 64], sizes = [8, 64], strides = [1, 1]} : vector<8x192xf32> to vector<8x64xf32>
    %226 = vector.extract_strided_slice %221 {offsets = [0, 128], sizes = [8, 64], strides = [1, 1]} : vector<8x192xf32> to vector<8x64xf32>
    %227 = arith.mulf %225, %208 : vector<8x64xf32>
    %228 = arith.mulf %224, %223 : vector<8x64xf32>
    %229 = arith.addf %227, %228 : vector<8x64xf32>
    %230 = math.tanh %229 : vector<8x64xf32>
    %231 = arith.mulf %226, %230 : vector<8x64xf32>
    %c7_i32_81 = arith.constant 7 : i32
    %232 = arith.index_cast %c7_i32_81 : i32 to index
    %c0_82 = arith.constant 0 : index
    %c0_83 = arith.constant 0 : index
    %233 = vector.load %arg8[%232, %c0_82, %c0_83] : memref<8x8x256xf32, #tpu.memory_space<vmem>>, vector<1x8x256xf32>
    %234 = vector.shape_cast %233 : vector<1x8x256xf32> to vector<8x256xf32>
    %cst_84 = arith.constant dense<0.000000e+00> : vector<8x256xf32>
    %235 = tpu.matmul %231, %2, %cst_84 {dimension_numbers = #tpu.dot_dimension_numbers<[1], [0], [0], [1], [0, 0, 1, 1], [], []>} : vector<8x64xf32>, vector<64x256xf32>, vector<8x256xf32> -> vector<8x256xf32>
    %236 = arith.addf %234, %235 : vector<8x256xf32>
    %237 = vector.extract_strided_slice %236 {offsets = [0, 0], sizes = [8, 192], strides = [1, 1]} : vector<8x256xf32> to vector<8x192xf32>
    %238 = arith.negf %237 : vector<8x192xf32>
    %239 = math.exp %238 : vector<8x192xf32>
    %cst_85 = arith.constant 1.000000e+00 : f32
    %240 = vector.broadcast %cst_85 : f32 to vector<8x192xf32>
    %241 = arith.addf %240, %239 : vector<8x192xf32>
    %242 = arith.divf %240, %241 : vector<8x192xf32>
    %243 = vector.extract_strided_slice %236 {offsets = [0, 192], sizes = [8, 64], strides = [1, 1]} : vector<8x256xf32> to vector<8x64xf32>
    %244 = math.tanh %243 : vector<8x64xf32>
    %245 = vector.extract_strided_slice %242 {offsets = [0, 0], sizes = [8, 64], strides = [1, 1]} : vector<8x192xf32> to vector<8x64xf32>
    %246 = vector.extract_strided_slice %242 {offsets = [0, 64], sizes = [8, 64], strides = [1, 1]} : vector<8x192xf32> to vector<8x64xf32>
    %247 = vector.extract_strided_slice %242 {offsets = [0, 128], sizes = [8, 64], strides = [1, 1]} : vector<8x192xf32> to vector<8x64xf32>
    %248 = arith.mulf %246, %229 : vector<8x64xf32>
    %249 = arith.mulf %245, %244 : vector<8x64xf32>
    %250 = arith.addf %248, %249 : vector<8x64xf32>
    %251 = math.tanh %250 : vector<8x64xf32>
    %252 = arith.mulf %247, %251 : vector<8x64xf32>
    %c8_i32_86 = arith.constant 8 : i32
    %c0_87 = arith.constant 0 : index
    %c0_88 = arith.constant 0 : index
    %253 = vector.load %arg5[%c0_87, %c0_88] : memref<64x128xf32, #tpu.memory_space<vmem>>, vector<64x128xf32>
    %cst_89 = arith.constant dense<0.000000e+00> : vector<8x128xf32>
    %254 = tpu.matmul %252, %253, %cst_89 {dimension_numbers = #tpu.dot_dimension_numbers<[1], [0], [0], [1], [0, 0, 1, 1], [], []>} : vector<8x64xf32>, vector<64x128xf32>, vector<8x128xf32> -> vector<8x128xf32>
    %c0_90 = arith.constant 0 : index
    %c0_91 = arith.constant 0 : index
    %255 = vector.load %arg6[%c0_90, %c0_91] : memref<1x128xf32, #tpu.memory_space<vmem>>, vector<1x128xf32>
    %256 = vector.broadcast %255 : vector<1x128xf32> to vector<8x128xf32>
    %257 = arith.addf %254, %256 : vector<8x128xf32>
    %c0_92 = arith.constant 0 : index
    %c0_93 = arith.constant 0 : index
    %258 = vector.load %arg7[%c0_92, %c0_93] : memref<8x128xf32, #tpu.memory_space<vmem>>, vector<8x128xf32>
    tpu.vector_store %arg7[%c0_92, %c0_93], %257 {strides = array<i32>} : memref<8x128xf32, #tpu.memory_space<vmem>>, vector<8x128xf32>,
    return
  }
  func.func @transform_0(%arg0: i32) -> (i32, i32, i32) {
    %c0_i32 = arith.constant 0 : i32
    %c0_i32_0 = arith.constant 0 : i32
    %c0_i32_1 = arith.constant 0 : i32
    return %c0_i32, %arg0, %c0_i32_0 : i32, i32, i32
  }
  func.func @transform_1(%arg0: i32) -> (i32, i32) {
    %c0_i32 = arith.constant 0 : i32
    %c0_i32_0 = arith.constant 0 : i32
    %c0_i32_1 = arith.constant 0 : i32
    return %c0_i32, %c0_i32_0 : i32, i32
  }
  func.func @transform_2(%arg0: i32) -> (i32, i32) {
    %c0_i32 = arith.constant 0 : i32
    %c0_i32_0 = arith.constant 0 : i32
    %c0_i32_1 = arith.constant 0 : i32
    return %c0_i32, %c0_i32_0 : i32, i32
  }
  func.func @transform_3(%arg0: i32) -> (i32, i32) {
    %c0_i32 = arith.constant 0 : i32
    %c0_i32_0 = arith.constant 0 : i32
    %c0_i32_1 = arith.constant 0 : i32
    return %c0_i32, %c0_i32_0 : i32, i32
  }
  func.func @transform_4(%arg0: i32) -> (i32, i32) {
    %c0_i32 = arith.constant 0 : i32
    %c0_i32_0 = arith.constant 0 : i32
    %c0_i32_1 = arith.constant 0 : i32
    return %c0_i32, %c0_i32_0 : i32, i32
  }
  func.func @transform_5(%arg0: i32) -> (i32, i32) {
    %c0_i32 = arith.constant 0 : i32
    %c0_i32_0 = arith.constant 0 : i32
    %c0_i32_1 = arith.constant 0 : i32
    return %c0_i32, %c0_i32_0 : i32, i32
  }
  func.func @transform_6(%arg0: i32) -> (i32, i32) {
    %c0_i32 = arith.constant 0 : i32
    %c0_i32_0 = arith.constant 0 : i32
    return %arg0, %c0_i32 : i32, i32
  }
}

</mosaic_0001>

<llo_original>
// kernel: tpu_custom_call.1
$region0: #{tpu_custom_call.1}
  #allocation0 [shape = 'u32[]', space=smem, size = 0x4, offset = 0x4, fixed_abs, tag = 'smem constant byte address 0x4 - core index']
  #allocation1 [shape = 'u32[72,128]{1,0:T(1,128)}', space=vmem, size = 0x9000, scoped, tag = 'internal scratch']
  #allocation2 [shape = 'f32[8,8,256]{2,1,0:T(8,128)}', space=vmem, size = 0x10000, scoped, tag = 'scratch operand']
  %s0 = inlined_call_operand.hbm [shape: f32[8,8,16], index: 0, kind: input, shape index: {}]
  %s1 = inlined_call_operand.hbm [shape: f32[16,256], index: 1, kind: input, shape index: {}]
  %s2 = inlined_call_operand.hbm [shape: f32[1,256], index: 2, kind: input, shape index: {}]
  %s3 = inlined_call_operand.hbm [shape: f32[64,256], index: 3, kind: input, shape index: {}]
  %s4 = inlined_call_operand.hbm [shape: f32[64,128], index: 4, kind: input, shape index: {}]
  %s5 = inlined_call_operand.vmem [shape: f32[1,128], index: 5, kind: input, shape index: {}]
  %s6 = inlined_call_operand.hbm [shape: f32[8,128], index: 6, kind: output, shape index: {}]
  %s7 = sld [smem:[#allocation0]]
  $region54: #{tpu_custom_call.1} parent=0
    _
  %s9 = ssub.s32 1, %s7
  %s10 = scalar_select 0, %s9, %s7
  $region1: #{tpu_custom_call.1} parent=0
    #allocation3 [shape = 'u8[32768]{0}', space=vmem, size = 0x8000, scoped, tag = 'input window, operand 0, single buffered']
    #allocation4 [shape = 's32[1]{0}', space=sflag, size = 0x4, scoped, tag = 'scoped memory for tpu_custom_call.1']
    #allocation5 [shape = 's32[1]{0}', space=sflag, size = 0x4, scoped, tag = 'scoped memory for tpu_custom_call.1']
    #allocation6 [shape = 'u8[16384]{0}', space=vmem, size = 0x4000, scoped, tag = 'input window, operand 1, single buffered']
    #allocation7 [shape = 's32[1]{0}', space=sflag, size = 0x4, scoped, tag = 'scoped memory for tpu_custom_call.1']
    #allocation8 [shape = 'u8[1024]{0}', space=vmem, size = 0x400, scoped, tag = 'input window, operand 2, single buffered']
    #allocation9 [shape = 'u8[65536]{0}', space=vmem, size = 0x10000, scoped, tag = 'input window, operand 3, single buffered']
    #allocation10 [shape = 's32[1]{0}', space=sflag, size = 0x4, scoped, tag = 'scoped memory for tpu_custom_call.1']
    #allocation11 [shape = 'u8[32768]{0}', space=vmem, size = 0x8000, scoped, tag = 'input window, operand 4, single buffered']
    #allocation12 [shape = 'u8[4096]{0}', space=vmem, size = 0x1000, scoped, tag = 'output window, operand 0, single buffered']
    %11 = vsyncpa [#allocation4], 0
    %12 = vsyncpa [#allocation7], 0
    %13 = vsyncpa [#allocation10], 0
    %14 = vsyncpa [#allocation5], 0
    // Predicated region
    $region2: #{tpu_custom_call.1} parent=1 // pred_check
      _
    $region3: #{tpu_custom_call.1} parent=1 // pred_check_branch
      %16 = sbr.rel (0) target = $region5
    $region4: #{tpu_custom_call.1} parent=1 // pred_region
      %18 = vsyncadd [#allocation4], 0
      %s19 = sshll.u32 %s0, 4
      %s20 = int_to_ptr.hbm [resolvable:$true] %s19
      %s21 = sshll.u32 [#allocation3], 4
      %s22 = int_to_ptr.vmem [resolvable:$true] %s21
      %27 = dma.hbm_to_vmem [thread:$0]  %s20, 1024, %s22, [#allocation4], 128, 128, 8
    $region5: #{tpu_custom_call.1} parent=1 // pred_fallthru
      _
    // Predicated region
    $region6: #{tpu_custom_call.1} parent=1 // pred_check
      _
    $region7: #{tpu_custom_call.1} parent=1 // pred_check_branch
      %29 = sbr.rel (0) target = $region9
    $region8: #{tpu_custom_call.1} parent=1 // pred_region
      %31 = vsyncadd [#allocation7], 0
      %s32 = sshll.u32 %s1, 4
      %s33 = int_to_ptr.hbm [resolvable:$true] %s32
      %s34 = sshll.u32 [#allocation6], 4
      %s35 = int_to_ptr.vmem [resolvable:$true] %s34
      %40 = dma.hbm_to_vmem [thread:$0]  %s33, 512, %s35, [#allocation7], 256, 256, 16
    $region9: #{tpu_custom_call.1} parent=1 // pred_fallthru
      _
    // Predicated region
    $region10: #{tpu_custom_call.1} parent=1 // pred_check
      _
    $region11: #{tpu_custom_call.1} parent=1 // pred_check_branch
      %42 = sbr.rel (0) target = $region13
    $region12: #{tpu_custom_call.1} parent=1 // pred_region
      %44 = vsyncadd [#allocation7], 0
      %s46 = sshll.u32 %s2, 4
      %s47 = int_to_ptr.hbm [resolvable:$true] %s46
      %s48 = sshll.u32 [#allocation8], 4
      %s49 = int_to_ptr.vmem [resolvable:$true] %s48
      %51 = dma.hbm_to_vmem [thread:$0]  %s47, 32, %s49, [#allocation7]
    $region13: #{tpu_custom_call.1} parent=1 // pred_fallthru
      _
    // Predicated region
    $region14: #{tpu_custom_call.1} parent=1 // pred_check
      _
    $region15: #{tpu_custom_call.1} parent=1 // pred_check_branch
      %53 = sbr.rel (0) target = $region17
    $region16: #{tpu_custom_call.1} parent=1 // pred_region
      %55 = vsyncadd [#allocation10], 0
      %s56 = sshll.u32 %s3, 4
      %s57 = int_to_ptr.hbm [resolvable:$true] %s56
      %s58 = sshll.u32 [#allocation9], 4
      %s59 = int_to_ptr.vmem [resolvable:$true] %s58
      %64 = dma.hbm_to_vmem [thread:$0]  %s57, 2048, %s59, [#allocation10], 256, 256, 16
    $region17: #{tpu_custom_call.1} parent=1 // pred_fallthru
      _
    // Predicated region
    $region18: #{tpu_custom_call.1} parent=1 // pred_check
      _
    $region19: #{tpu_custom_call.1} parent=1 // pred_check_branch
      %66 = sbr.rel (0) target = $region21
    $region20: #{tpu_custom_call.1} parent=1 // pred_region
      %68 = vsyncadd [#allocation10], 0
      %s69 = sshll.u32 %s4, 4
      %s70 = int_to_ptr.hbm [resolvable:$true] %s69
      %s71 = sshll.u32 [#allocation11], 4
      %s72 = int_to_ptr.vmem [resolvable:$true] %s71
      %77 = dma.hbm_to_vmem [thread:$0]  %s70, 1024, %s72, [#allocation10], 128, 128, 8
    $region21: #{tpu_custom_call.1} parent=1 // pred_fallthru
      _
    // Predicated region
    $region22: #{tpu_custom_call.1} parent=1 // pred_check
      _
    $region23: #{tpu_custom_call.1} parent=1 // pred_check_branch
      %79 = sbr.rel (0) target = $region25
    $region24: #{tpu_custom_call.1} parent=1 // pred_region
      _
    $region25: #{tpu_custom_call.1} parent=1 // pred_fallthru
      _
    // Predicated region
    $region26: #{tpu_custom_call.1} parent=1 // pred_check
      _
    $region27: #{tpu_custom_call.1} parent=1 // pred_check_branch
      %81 = sbr.rel (0) target = $region29
    $region28: #{tpu_custom_call.1} parent=1 // pred_region
      %83 = dma.done [#allocation4], 1024
    $region29: #{tpu_custom_call.1} parent=1 // pred_fallthru
      _
    // Predicated region
    $region30: #{tpu_custom_call.1} parent=1 // pred_check
      _
    $region31: #{tpu_custom_call.1} parent=1 // pred_check_branch
      %85 = sbr.rel (0) target = $region33
    $region32: #{tpu_custom_call.1} parent=1 // pred_region
      %87 = dma.done [#allocation7], 512
    $region33: #{tpu_custom_call.1} parent=1 // pred_fallthru
      _
    // Predicated region
    $region34: #{tpu_custom_call.1} parent=1 // pred_check
      _
    $region35: #{tpu_custom_call.1} parent=1 // pred_check_branch
      %89 = sbr.rel (0) target = $region37
    $region36: #{tpu_custom_call.1} parent=1 // pred_region
      %91 = dma.done [#allocation7], 32
    $region37: #{tpu_custom_call.1} parent=1 // pred_fallthru
      _
    // Predicated region
    $region38: #{tpu_custom_call.1} parent=1 // pred_check
      _
    $region39: #{tpu_custom_call.1} parent=1 // pred_check_branch
      %93 = sbr.rel (0) target = $region41
    $region40: #{tpu_custom_call.1} parent=1 // pred_region
      %95 = dma.done [#allocation10], 2048
    $region41: #{tpu_custom_call.1} parent=1 // pred_fallthru
      _
    // Predicated region
    $region42: #{tpu_custom_call.1} parent=1 // pred_check
      _
    $region43: #{tpu_custom_call.1} parent=1 // pred_check_branch
      %97 = sbr.rel (0) target = $region45
    $region44: #{tpu_custom_call.1} parent=1 // pred_region
      %99 = dma.done [#allocation10], 1024
    $region45: #{tpu_custom_call.1} parent=1 // pred_fallthru
      _
    %v100 = vld [vmem:[#allocation6] sm:$0xff]
    %v101 = vld [vmem:[#allocation6 + $0x8] sm:$0xff]
    %v102 = vld [vmem:[#allocation6 + $0x10] sm:$0xff]
    %v103 = vld [vmem:[#allocation6 + $0x18] sm:$0xff]
    %v104 = vld [vmem:[#allocation8] sm:$0x3]
    %v105 = vld [vmem:[#allocation9] sm:$0xff]
    %v106 = vld [vmem:[#allocation9 + $0x8] sm:$0xff]
    %v107 = vld [vmem:[#allocation9 + $0x10] sm:$0xff]
    %v108 = vld [vmem:[#allocation9 + $0x18] sm:$0xff]
    %v109 = vld [vmem:[#allocation9 + $0x20] sm:$0xff]
    %v110 = vld [vmem:[#allocation9 + $0x28] sm:$0xff]
    %v111 = vld [vmem:[#allocation9 + $0x30] sm:$0xff]
    %v112 = vld [vmem:[#allocation9 + $0x38] sm:$0xff]
    %v113 = vld [vmem:[#allocation9 + $0x40] sm:$0xff]
    %v114 = vld [vmem:[#allocation9 + $0x48] sm:$0xff]
    %v115 = vld [vmem:[#allocation9 + $0x50] sm:$0xff]
    %v116 = vld [vmem:[#allocation9 + $0x58] sm:$0xff]
    %v117 = vld [vmem:[#allocation9 + $0x60] sm:$0xff]
    %v118 = vld [vmem:[#allocation9 + $0x68] sm:$0xff]
    %v119 = vld [vmem:[#allocation9 + $0x70] sm:$0xff]
    %v120 = vld [vmem:[#allocation9 + $0x78] sm:$0xff]
    %v121 = vld [vmem:[#allocation3] sm:$0xff]
    %v123 = vperm.slane %v104, 0
    %v124 = vperm.slane %v104, 1
    %vm127 = vcmask 130048
    %v129 = vsel %vm127, %v121, 0
    %131 = vmatpush.msra.mxu0 0.0
    %132 = vmatpush.msra.mxu0 0.0
    %133 = vmatpush.msra.mxu0 0.0
    %134 = vmatpush.msra.mxu0 0.0
    %135 = vmatpush.msra.mxu0 0.0
    %136 = vmatpush.msra.mxu0 0.0
    %137 = vmatpush.msra.mxu0 0.0
    %138 = vmatpush.msra.mxu0 0.0
    %139 = vmatpush.msra.mxu0 0.0
    %140 = vmatpush.msra.mxu0 0.0
    %141 = vmatpush.msra.mxu0 0.0
    %142 = vmatpush.msra.mxu0 0.0
    %143 = vmatpush.msra.mxu0 0.0
    %144 = vmatpush.msra.mxu0 0.0
    %145 = vmatpush.msra.mxu0 %v102
    %146 = vmatpush.msra.mxu0 %v100
    %147 = vmatmul.f32.gmra.mxu0 %v129
    %v148 = vpop.f32.mrf.mxu0
    %v149 = vadd.f32 %v123, %v148
    %150 = vdwg.mxu0
    %151 = vmatpush.msra.mxu0 0.0
    %152 = vmatpush.msra.mxu0 0.0
    %153 = vmatpush.msra.mxu0 0.0
    %154 = vmatpush.msra.mxu0 0.0
    %155 = vmatpush.msra.mxu0 0.0
    %156 = vmatpush.msra.mxu0 0.0
    %157 = vmatpush.msra.mxu0 0.0
    %158 = vmatpush.msra.mxu0 0.0
    %159 = vmatpush.msra.mxu0 0.0
    %160 = vmatpush.msra.mxu0 0.0
    %161 = vmatpush.msra.mxu0 0.0
    %162 = vmatpush.msra.mxu0 0.0
    %163 = vmatpush.msra.mxu0 0.0
    %164 = vmatpush.msra.mxu0 0.0
    %165 = vmatpush.msra.mxu0 %v103
    %166 = vmatpush.msra.mxu0 %v101
    %167 = vmatmul.f32.gmra.mxu0 %v129
    %v168 = vpop.f32.mrf.mxu0
    %v169 = vadd.f32 %v124, %v168
    %170 = vdwg.mxu0
    %171 = vst [vmem:[#allocation2] sm:$0xff] %v149
    %172 = vst [vmem:[#allocation2 + $0x8] sm:$0xff] %v169
    %s173 = scalar_lea.vmem [#allocation3], 8
    %v174 = vld [vmem:[%s173] sm:$0xff]
    %v176 = vsel %vm127, %v174, 0
    %178 = vmatpush.msra.mxu0 0.0
    %179 = vmatpush.msra.mxu0 0.0
    %180 = vmatpush.msra.mxu0 0.0
    %181 = vmatpush.msra.mxu0 0.0
    %182 = vmatpush.msra.mxu0 0.0
    %183 = vmatpush.msra.mxu0 0.0
    %184 = vmatpush.msra.mxu0 0.0
    %185 = vmatpush.msra.mxu0 0.0
    %186 = vmatpush.msra.mxu0 0.0
    %187 = vmatpush.msra.mxu0 0.0
    %188 = vmatpush.msra.mxu0 0.0
    %189 = vmatpush.msra.mxu0 0.0
    %190 = vmatpush.msra.mxu0 0.0
    %191 = vmatpush.msra.mxu0 0.0
    %192 = vmatpush.msra.mxu0 %v102
    %193 = vmatpush.msra.mxu0 %v100
    %194 = vmatmul.f32.gmra.mxu0 %v176
    %v195 = vpop.f32.mrf.mxu0
    %v196 = vadd.f32 %v123, %v195
    %197 = vdwg.mxu0
    %198 = vmatpush.msra.mxu0 0.0
    %199 = vmatpush.msra.mxu0 0.0
    %200 = vmatpush.msra.mxu0 0.0
    %201 = vmatpush.msra.mxu0 0.0
    %202 = vmatpush.msra.mxu0 0.0
    %203 = vmatpush.msra.mxu0 0.0
    %204 = vmatpush.msra.mxu0 0.0
    %205 = vmatpush.msra.mxu0 0.0
    %206 = vmatpush.msra.mxu0 0.0
    %207 = vmatpush.msra.mxu0 0.0
    %208 = vmatpush.msra.mxu0 0.0
    %209 = vmatpush.msra.mxu0 0.0
    %210 = vmatpush.msra.mxu0 0.0
    %211 = vmatpush.msra.mxu0 0.0
    %212 = vmatpush.msra.mxu0 %v103
    %213 = vmatpush.msra.mxu0 %v101
    %214 = vmatmul.f32.gmra.mxu0 %v176
    %v215 = vpop.f32.mrf.mxu0
    %v216 = vadd.f32 %v124, %v215
    %217 = vdwg.mxu0
    %s218 = scalar_lea.vmem [#allocation2], 16
    %219 = vst [vmem:[%s218] sm:$0xff] %v196
    %220 = vst [vmem:[%s218 + $0x8] sm:$0xff] %v216
    %s221 = scalar_lea.vmem [#allocation3], 16
    %v222 = vld [vmem:[%s221] sm:$0xff]
    %v224 = vsel %vm127, %v222, 0
    %226 = vmatpush.msra.mxu0 0.0
    %227 = vmatpush.msra.mxu0 0.0
    %228 = vmatpush.msra.mxu0 0.0
    %229 = vmatpush.msra.mxu0 0.0
    %230 = vmatpush.msra.mxu0 0.0
    %231 = vmatpush.msra.mxu0 0.0
    %232 = vmatpush.msra.mxu0 0.0
    %233 = vmatpush.msra.mxu0 0.0
    %234 = vmatpush.msra.mxu0 0.0
    %235 = vmatpush.msra.mxu0 0.0
    %236 = vmatpush.msra.mxu0 0.0
    %237 = vmatpush.msra.mxu0 0.0
    %238 = vmatpush.msra.mxu0 0.0
    %239 = vmatpush.msra.mxu0 0.0
    %240 = vmatpush.msra.mxu0 %v102
    %241 = vmatpush.msra.mxu0 %v100
    %242 = vmatmul.f32.gmra.mxu0 %v224
    %v243 = vpop.f32.mrf.mxu0
    %v244 = vadd.f32 %v123, %v243
    %245 = vdwg.mxu0
    %246 = vmatpush.msra.mxu0 0.0
    %247 = vmatpush.msra.mxu0 0.0
    %248 = vmatpush.msra.mxu0 0.0
    %249 = vmatpush.msra.mxu0 0.0
    %250 = vmatpush.msra.mxu0 0.0
    %251 = vmatpush.msra.mxu0 0.0
    %252 = vmatpush.msra.mxu0 0.0
    %253 = vmatpush.msra.mxu0 0.0
    %254 = vmatpush.msra.mxu0 0.0
    %255 = vmatpush.msra.mxu0 0.0
    %256 = vmatpush.msra.mxu0 0.0
    %257 = vmatpush.msra.mxu0 0.0
    %258 = vmatpush.msra.mxu0 0.0
    %259 = vmatpush.msra.mxu0 0.0
    %260 = vmatpush.msra.mxu0 %v103
    %261 = vmatpush.msra.mxu0 %v101
    %262 = vmatmul.f32.gmra.mxu0 %v224
    %v263 = vpop.f32.mrf.mxu0
    %v264 = vadd.f32 %v124, %v263
    %265 = vdwg.mxu0
    %s266 = scalar_lea.vmem [#allocation2], 32
    %267 = vst [vmem:[%s266] sm:$0xff] %v244
    %268 = vst [vmem:[%s266 + $0x8] sm:$0xff] %v264
    %s269 = scalar_lea.vmem [#allocation3], 24
    %v270 = vld [vmem:[%s269] sm:$0xff]
    %v272 = vsel %vm127, %v270, 0
    %274 = vmatpush.msra.mxu0 0.0
    %275 = vmatpush.msra.mxu0 0.0
    %276 = vmatpush.msra.mxu0 0.0
    %277 = vmatpush.msra.mxu0 0.0
    %278 = vmatpush.msra.mxu0 0.0
    %279 = vmatpush.msra.mxu0 0.0
    %280 = vmatpush.msra.mxu0 0.0
    %281 = vmatpush.msra.mxu0 0.0
    %282 = vmatpush.msra.mxu0 0.0
    %283 = vmatpush.msra.mxu0 0.0
    %284 = vmatpush.msra.mxu0 0.0
    %285 = vmatpush.msra.mxu0 0.0
    %286 = vmatpush.msra.mxu0 0.0
    %287 = vmatpush.msra.mxu0 0.0
    %288 = vmatpush.msra.mxu0 %v102
    %289 = vmatpush.msra.mxu0 %v100
    %290 = vmatmul.f32.gmra.mxu0 %v272
    %v291 = vpop.f32.mrf.mxu0
    %v292 = vadd.f32 %v123, %v291
    %293 = vdwg.mxu0
    %294 = vmatpush.msra.mxu0 0.0
    %295 = vmatpush.msra.mxu0 0.0
    %296 = vmatpush.msra.mxu0 0.0
    %297 = vmatpush.msra.mxu0 0.0
    %298 = vmatpush.msra.mxu0 0.0
    %299 = vmatpush.msra.mxu0 0.0
    %300 = vmatpush.msra.mxu0 0.0
    %301 = vmatpush.msra.mxu0 0.0
    %302 = vmatpush.msra.mxu0 0.0
    %303 = vmatpush.msra.mxu0 0.0
    %304 = vmatpush.msra.mxu0 0.0
    %305 = vmatpush.msra.mxu0 0.0
    %306 = vmatpush.msra.mxu0 0.0
    %307 = vmatpush.msra.mxu0 0.0
    %308 = vmatpush.msra.mxu0 %v103
    %309 = vmatpush.msra.mxu0 %v101
    %310 = vmatmul.f32.gmra.mxu0 %v272
    %v311 = vpop.f32.mrf.mxu0
    %v312 = vadd.f32 %v124, %v311
    %313 = vdwg.mxu0
    %s314 = scalar_lea.vmem [#allocation2], 48
    %315 = vst [vmem:[%s314] sm:$0xff] %v292
    %316 = vst [vmem:[%s314 + $0x8] sm:$0xff] %v312
    %s317 = scalar_lea.vmem [#allocation3], 32
    %v318 = vld [vmem:[%s317] sm:$0xff]
    %v320 = vsel %vm127, %v318, 0
    %322 = vmatpush.msra.mxu0 0.0
    %323 = vmatpush.msra.mxu0 0.0
    %324 = vmatpush.msra.mxu0 0.0
    %325 = vmatpush.msra.mxu0 0.0
    %326 = vmatpush.msra.mxu0 0.0
    %327 = vmatpush.msra.mxu0 0.0
    %328 = vmatpush.msra.mxu0 0.0
    %329 = vmatpush.msra.mxu0 0.0
    %330 = vmatpush.msra.mxu0 0.0
    %331 = vmatpush.msra.mxu0 0.0
    %332 = vmatpush.msra.mxu0 0.0
    %333 = vmatpush.msra.mxu0 0.0
    %334 = vmatpush.msra.mxu0 0.0
    %335 = vmatpush.msra.mxu0 0.0
    %336 = vmatpush.msra.mxu0 %v102
    %337 = vmatpush.msra.mxu0 %v100
    %338 = vmatmul.f32.gmra.mxu0 %v320
    %v339 = vpop.f32.mrf.mxu0
    %v340 = vadd.f32 %v123, %v339
    %341 = vdwg.mxu0
    %342 = vmatpush.msra.mxu0 0.0
    %343 = vmatpush.msra.mxu0 0.0
    %344 = vmatpush.msra.mxu0 0.0
    %345 = vmatpush.msra.mxu0 0.0
    %346 = vmatpush.msra.mxu0 0.0
    %347 = vmatpush.msra.mxu0 0.0
    %348 = vmatpush.msra.mxu0 0.0
    %349 = vmatpush.msra.mxu0 0.0
    %350 = vmatpush.msra.mxu0 0.0
    %351 = vmatpush.msra.mxu0 0.0
    %352 = vmatpush.msra.mxu0 0.0
    %353 = vmatpush.msra.mxu0 0.0
    %354 = vmatpush.msra.mxu0 0.0
    %355 = vmatpush.msra.mxu0 0.0
    %356 = vmatpush.msra.mxu0 %v103
    %357 = vmatpush.msra.mxu0 %v101
    %358 = vmatmul.f32.gmra.mxu0 %v320
    %v359 = vpop.f32.mrf.mxu0
    %v360 = vadd.f32 %v124, %v359
    %361 = vdwg.mxu0
    %s362 = scalar_lea.vmem [#allocation2], 64
    %363 = vst [vmem:[%s362] sm:$0xff] %v340
    %364 = vst [vmem:[%s362 + $0x8] sm:$0xff] %v360
    %s365 = scalar_lea.vmem [#allocation3], 40
    %v366 = vld [vmem:[%s365] sm:$0xff]
    %v368 = vsel %vm127, %v366, 0
    %370 = vmatpush.msra.mxu0 0.0
    %371 = vmatpush.msra.mxu0 0.0
    %372 = vmatpush.msra.mxu0 0.0
    %373 = vmatpush.msra.mxu0 0.0
    %374 = vmatpush.msra.mxu0 0.0
    %375 = vmatpush.msra.mxu0 0.0
    %376 = vmatpush.msra.mxu0 0.0
    %377 = vmatpush.msra.mxu0 0.0
    %378 = vmatpush.msra.mxu0 0.0
    %379 = vmatpush.msra.mxu0 0.0
    %380 = vmatpush.msra.mxu0 0.0
    %381 = vmatpush.msra.mxu0 0.0
    %382 = vmatpush.msra.mxu0 0.0
    %383 = vmatpush.msra.mxu0 0.0
    %384 = vmatpush.msra.mxu0 %v102
    %385 = vmatpush.msra.mxu0 %v100
    %386 = vmatmul.f32.gmra.mxu0 %v368
    %v387 = vpop.f32.mrf.mxu0
    %v388 = vadd.f32 %v123, %v387
    %389 = vdwg.mxu0
    %390 = vmatpush.msra.mxu0 0.0
    %391 = vmatpush.msra.mxu0 0.0
    %392 = vmatpush.msra.mxu0 0.0
    %393 = vmatpush.msra.mxu0 0.0
    %394 = vmatpush.msra.mxu0 0.0
    %395 = vmatpush.msra.mxu0 0.0
    %396 = vmatpush.msra.mxu0 0.0
    %397 = vmatpush.msra.mxu0 0.0
    %398 = vmatpush.msra.mxu0 0.0
    %399 = vmatpush.msra.mxu0 0.0
    %400 = vmatpush.msra.mxu0 0.0
    %401 = vmatpush.msra.mxu0 0.0
    %402 = vmatpush.msra.mxu0 0.0
    %403 = vmatpush.msra.mxu0 0.0
    %404 = vmatpush.msra.mxu0 %v103
    %405 = vmatpush.msra.mxu0 %v101
    %406 = vmatmul.f32.gmra.mxu0 %v368
    %v407 = vpop.f32.mrf.mxu0
    %v408 = vadd.f32 %v124, %v407
    %409 = vdwg.mxu0
    %s410 = scalar_lea.vmem [#allocation2], 80
    %411 = vst [vmem:[%s410] sm:$0xff] %v388
    %412 = vst [vmem:[%s410 + $0x8] sm:$0xff] %v408
    %s413 = scalar_lea.vmem [#allocation3], 48
    %v414 = vld [vmem:[%s413] sm:$0xff]
    %v416 = vsel %vm127, %v414, 0
    %418 = vmatpush.msra.mxu0 0.0
    %419 = vmatpush.msra.mxu0 0.0
    %420 = vmatpush.msra.mxu0 0.0
    %421 = vmatpush.msra.mxu0 0.0
    %422 = vmatpush.msra.mxu0 0.0
    %423 = vmatpush.msra.mxu0 0.0
    %424 = vmatpush.msra.mxu0 0.0
    %425 = vmatpush.msra.mxu0 0.0
    %426 = vmatpush.msra.mxu0 0.0
    %427 = vmatpush.msra.mxu0 0.0
    %428 = vmatpush.msra.mxu0 0.0
    %429 = vmatpush.msra.mxu0 0.0
    %430 = vmatpush.msra.mxu0 0.0
    %431 = vmatpush.msra.mxu0 0.0
    %432 = vmatpush.msra.mxu0 %v102
    %433 = vmatpush.msra.mxu0 %v100
    %434 = vmatmul.f32.gmra.mxu0 %v416
    %v435 = vpop.f32.mrf.mxu0
    %v436 = vadd.f32 %v123, %v435
    %437 = vdwg.mxu0
    %438 = vmatpush.msra.mxu0 0.0
    %439 = vmatpush.msra.mxu0 0.0
    %440 = vmatpush.msra.mxu0 0.0
    %441 = vmatpush.msra.mxu0 0.0
    %442 = vmatpush.msra.mxu0 0.0
    %443 = vmatpush.msra.mxu0 0.0
    %444 = vmatpush.msra.mxu0 0.0
    %445 = vmatpush.msra.mxu0 0.0
    %446 = vmatpush.msra.mxu0 0.0
    %447 = vmatpush.msra.mxu0 0.0
    %448 = vmatpush.msra.mxu0 0.0
    %449 = vmatpush.msra.mxu0 0.0
    %450 = vmatpush.msra.mxu0 0.0
    %451 = vmatpush.msra.mxu0 0.0
    %452 = vmatpush.msra.mxu0 %v103
    %453 = vmatpush.msra.mxu0 %v101
    %454 = vmatmul.f32.gmra.mxu0 %v416
    %v455 = vpop.f32.mrf.mxu0
    %v456 = vadd.f32 %v124, %v455
    %457 = vdwg.mxu0
    %s458 = scalar_lea.vmem [#allocation2], 96
    %459 = vst [vmem:[%s458] sm:$0xff] %v436
    %460 = vst [vmem:[%s458 + $0x8] sm:$0xff] %v456
    %s461 = scalar_lea.vmem [#allocation3], 56
    %v462 = vld [vmem:[%s461] sm:$0xff]
    %v464 = vsel %vm127, %v462, 0
    %466 = vmatpush.msra.mxu0 0.0
    %467 = vmatpush.msra.mxu0 0.0
    %468 = vmatpush.msra.mxu0 0.0
    %469 = vmatpush.msra.mxu0 0.0
    %470 = vmatpush.msra.mxu0 0.0
    %471 = vmatpush.msra.mxu0 0.0
    %472 = vmatpush.msra.mxu0 0.0
    %473 = vmatpush.msra.mxu0 0.0
    %474 = vmatpush.msra.mxu0 0.0
    %475 = vmatpush.msra.mxu0 0.0
    %476 = vmatpush.msra.mxu0 0.0
    %477 = vmatpush.msra.mxu0 0.0
    %478 = vmatpush.msra.mxu0 0.0
    %479 = vmatpush.msra.mxu0 0.0
    %480 = vmatpush.msra.mxu0 %v102
    %481 = vmatpush.msra.mxu0 %v100
    %482 = vmatmul.f32.gmra.mxu0 %v464
    %v483 = vpop.f32.mrf.mxu0
    %v484 = vadd.f32 %v123, %v483
    %485 = vdwg.mxu0
    %486 = vmatpush.msra.mxu0 0.0
    %487 = vmatpush.msra.mxu0 0.0
    %488 = vmatpush.msra.mxu0 0.0
    %489 = vmatpush.msra.mxu0 0.0
    %490 = vmatpush.msra.mxu0 0.0
    %491 = vmatpush.msra.mxu0 0.0
    %492 = vmatpush.msra.mxu0 0.0
    %493 = vmatpush.msra.mxu0 0.0
    %494 = vmatpush.msra.mxu0 0.0
    %495 = vmatpush.msra.mxu0 0.0
    %496 = vmatpush.msra.mxu0 0.0
    %497 = vmatpush.msra.mxu0 0.0
    %498 = vmatpush.msra.mxu0 0.0
    %499 = vmatpush.msra.mxu0 0.0
    %500 = vmatpush.msra.mxu0 %v103
    %501 = vmatpush.msra.mxu0 %v101
    %502 = vmatmul.f32.gmra.mxu0 %v464
    %v503 = vpop.f32.mrf.mxu0
    %v504 = vadd.f32 %v124, %v503
    %505 = vdwg.mxu0
    %s506 = scalar_lea.vmem [#allocation2], 112
    %507 = vst [vmem:[%s506] sm:$0xff] %v484
    %508 = vst [vmem:[%s506 + $0x8] sm:$0xff] %v504
    %v509 = vld [vmem:[#allocation2] sm:$0xff]
    %v510 = vld [vmem:[#allocation2 + $0x8] sm:$0xff]
    %vm511 = vcmask 523264
    %v513 = vsel %vm511, 0.0, 0
    %515 = vmatpush.msra.mxu0 0.0
    %516 = vmatpush.msra.mxu0 0.0
    %517 = vmatpush.msra.mxu0 0.0
    %518 = vmatpush.msra.mxu0 0.0
    %519 = vmatpush.msra.mxu0 0.0
    %520 = vmatpush.msra.mxu0 0.0
    %521 = vmatpush.msra.mxu0 0.0
    %522 = vmatpush.msra.mxu0 0.0
    %523 = vmatpush.msra.mxu0 %v119
    %524 = vmatpush.msra.mxu0 %v117
    %525 = vmatpush.msra.mxu0 %v115
    %526 = vmatpush.msra.mxu0 %v113
    %527 = vmatpush.msra.mxu0 %v111
    %528 = vmatpush.msra.mxu0 %v109
    %529 = vmatpush.msra.mxu0 %v107
    %530 = vmatpush.msra.mxu0 %v105
    %531 = vmatmul.f32.gmra.mxu0 %v513
    %v532 = vpop.f32.mrf.mxu0
    %v533 = vadd.f32 0.0, %v532
    %534 = vdwg.mxu0
    %535 = vmatpush.msra.mxu0 0.0
    %536 = vmatpush.msra.mxu0 0.0
    %537 = vmatpush.msra.mxu0 0.0
    %538 = vmatpush.msra.mxu0 0.0
    %539 = vmatpush.msra.mxu0 0.0
    %540 = vmatpush.msra.mxu0 0.0
    %541 = vmatpush.msra.mxu0 0.0
    %542 = vmatpush.msra.mxu0 0.0
    %543 = vmatpush.msra.mxu0 %v120
    %544 = vmatpush.msra.mxu0 %v118
    %545 = vmatpush.msra.mxu0 %v116
    %546 = vmatpush.msra.mxu0 %v114
    %547 = vmatpush.msra.mxu0 %v112
    %548 = vmatpush.msra.mxu0 %v110
    %549 = vmatpush.msra.mxu0 %v108
    %550 = vmatpush.msra.mxu0 %v106
    %551 = vmatmul.f32.gmra.mxu0 %v513
    %v552 = vpop.f32.mrf.mxu0
    %v553 = vadd.f32 0.0, %v552
    %554 = vdwg.mxu0
    %v555 = vadd.f32 %v509, %v533
    %v556 = vadd.f32 %v510, %v553
    %v557 = vxor.u32 %v555, 2147483648
    %v558 = vxor.u32 %v556, 2147483648
    %v559 = vmul.f32 %v557, 1.442695
    %v560 = vpow.pop %v559
    %v561 = vmul.f32 %v558, 1.442695
    %v562 = vpow.pop %v561
    %v563 = vadd.f32 %v560, 1.0
    %v564 = vadd.f32 %v562, 1.0
    %v565 = vrcp.pop %v563
    %v566 = vmul.f32 %v563, %v565
    %v567 = vsub.f32 1.0, %v566
    %v568 = vmul.f32 %v565, %v567
    %v569 = vadd.f32 %v565, %v568
    %vm570 = vweird.f32 %v563
    %vm571 = vweird.f32 %v565
    %vm572 = vmor %vm570, %vm571
    %v573 = vsel %vm572, %v565, %v569
    %v574 = vand.u32 2147483647, %v563
    %vm575 = vcmp.eq.f32.partialorder %v574, 8.507059e+37
    %v576 = vand.u32 %v563, 2147483648
    %v577 = vor.u32 1.1754944e-38, %v576
    %v578 = vsel %vm575, %v577, %v573
    %v579 = vmul.f32 1.0, %v578
    %v580 = vrcp.pop %v564
    %v581 = vmul.f32 %v564, %v580
    %v582 = vsub.f32 1.0, %v581
    %v583 = vmul.f32 %v580, %v582
    %v584 = vadd.f32 %v580, %v583
    %vm585 = vweird.f32 %v564
    %vm586 = vweird.f32 %v580
    %vm587 = vmor %vm585, %vm586
    %v588 = vsel %vm587, %v580, %v584
    %v589 = vand.u32 2147483647, %v564
    %vm590 = vcmp.eq.f32.partialorder %v589, 8.507059e+37
    %v591 = vand.u32 %v564, 2147483648
    %v592 = vor.u32 1.1754944e-38, %v591
    %v593 = vsel %vm590, %v592, %v588
    %v594 = vmul.f32 1.0, %v593
    %v595 = vtanh.pop %v556
    %v596 = vmul.f32 %v579, 0.0
    %598 = vrot.lane.b32.xlu0 %v595, 64
    %v599 = vpop.permute.xlu0 %598
    %v601 = vmul.f32 %v579, %v599
    %603 = vrot.lane.b32.xlu0 %v601, 64
    %v604 = vpop.permute.xlu0 %603
    %v606 = vadd.f32 %v596, %v604
    %v607 = vtanh.pop %v606
    %609 = vrot.lane.b32.xlu0 %v607, 64
    %v610 = vpop.permute.xlu0 %609
    %v612 = vmul.f32 %v594, %v610
    %v613 = vld [vmem:[%s218] sm:$0xff]
    %v614 = vld [vmem:[%s218 + $0x8] sm:$0xff]
    %v616 = vsel %vm511, %v612, 0
    %618 = vmatpush.msra.mxu0 0.0
    %619 = vmatpush.msra.mxu0 0.0
    %620 = vmatpush.msra.mxu0 0.0
    %621 = vmatpush.msra.mxu0 0.0
    %622 = vmatpush.msra.mxu0 0.0
    %623 = vmatpush.msra.mxu0 0.0
    %624 = vmatpush.msra.mxu0 0.0
    %625 = vmatpush.msra.mxu0 0.0
    %626 = vmatpush.msra.mxu0 %v119
    %627 = vmatpush.msra.mxu0 %v117
    %628 = vmatpush.msra.mxu0 %v115
    %629 = vmatpush.msra.mxu0 %v113
    %630 = vmatpush.msra.mxu0 %v111
    %631 = vmatpush.msra.mxu0 %v109
    %632 = vmatpush.msra.mxu0 %v107
    %633 = vmatpush.msra.mxu0 %v105
    %634 = vmatmul.f32.gmra.mxu0 %v616
    %v635 = vpop.f32.mrf.mxu0
    %v636 = vadd.f32 0.0, %v635
    %637 = vdwg.mxu0
    %638 = vmatpush.msra.mxu0 0.0
    %639 = vmatpush.msra.mxu0 0.0
    %640 = vmatpush.msra.mxu0 0.0
    %641 = vmatpush.msra.mxu0 0.0
    %642 = vmatpush.msra.mxu0 0.0
    %643 = vmatpush.msra.mxu0 0.0
    %644 = vmatpush.msra.mxu0 0.0
    %645 = vmatpush.msra.mxu0 0.0
    %646 = vmatpush.msra.mxu0 %v120
    %647 = vmatpush.msra.mxu0 %v118
    %648 = vmatpush.msra.mxu0 %v116
    %649 = vmatpush.msra.mxu0 %v114
    %650 = vmatpush.msra.mxu0 %v112
    %651 = vmatpush.msra.mxu0 %v110
    %652 = vmatpush.msra.mxu0 %v108
    %653 = vmatpush.msra.mxu0 %v106
    %654 = vmatmul.f32.gmra.mxu0 %v616
    %v655 = vpop.f32.mrf.mxu0
    %v656 = vadd.f32 0.0, %v655
    %657 = vdwg.mxu0
    %v658 = vadd.f32 %v613, %v636
    %v659 = vadd.f32 %v614, %v656
    %v660 = vxor.u32 %v658, 2147483648
    %v661 = vxor.u32 %v659, 2147483648
    %v662 = vmul.f32 %v660, 1.442695
    %v663 = vpow.pop %v662
    %v664 = vmul.f32 %v661, 1.442695
    %v665 = vpow.pop %v664
    %v666 = vadd.f32 %v663, 1.0
    %v667 = vadd.f32 %v665, 1.0
    %v668 = vrcp.pop %v666
    %v669 = vmul.f32 %v666, %v668
    %v670 = vsub.f32 1.0, %v669
    %v671 = vmul.f32 %v668, %v670
    %v672 = vadd.f32 %v668, %v671
    %vm673 = vweird.f32 %v666
    %vm674 = vweird.f32 %v668
    %vm675 = vmor %vm673, %vm674
    %v676 = vsel %vm675, %v668, %v672
    %v677 = vand.u32 2147483647, %v666
    %vm678 = vcmp.eq.f32.partialorder %v677, 8.507059e+37
    %v679 = vand.u32 %v666, 2147483648
    %v680 = vor.u32 1.1754944e-38, %v679
    %v681 = vsel %vm678, %v680, %v676
    %v682 = vmul.f32 1.0, %v681
    %v683 = vrcp.pop %v667
    %v684 = vmul.f32 %v667, %v683
    %v685 = vsub.f32 1.0, %v684
    %v686 = vmul.f32 %v683, %v685
    %v687 = vadd.f32 %v683, %v686
    %vm688 = vweird.f32 %v667
    %vm689 = vweird.f32 %v683
    %vm690 = vmor %vm688, %vm689
    %v691 = vsel %vm690, %v683, %v687
    %v692 = vand.u32 2147483647, %v667
    %vm693 = vcmp.eq.f32.partialorder %v692, 8.507059e+37
    %v694 = vand.u32 %v667, 2147483648
    %v695 = vor.u32 1.1754944e-38, %v694
    %v696 = vsel %vm693, %v695, %v691
    %v697 = vmul.f32 1.0, %v696
    %v698 = vtanh.pop %v659
    %v699 = vmul.f32 %v682, %v606
    %701 = vrot.lane.b32.xlu0 %v698, 64
    %v702 = vpop.permute.xlu0 %701
    %v704 = vmul.f32 %v682, %v702
    %706 = vrot.lane.b32.xlu0 %v704, 64
    %v707 = vpop.permute.xlu0 %706
    %v709 = vadd.f32 %v699, %v707
    %v710 = vtanh.pop %v709
    %712 = vrot.lane.b32.xlu0 %v710, 64
    %v713 = vpop.permute.xlu0 %712
    %v715 = vmul.f32 %v697, %v713
    %v716 = vld [vmem:[%s266] sm:$0xff]
    %v717 = vld [vmem:[%s266 + $0x8] sm:$0xff]
    %v719 = vsel %vm511, %v715, 0
    %721 = vmatpush.msra.mxu0 0.0
    %722 = vmatpush.msra.mxu0 0.0
    %723 = vmatpush.msra.mxu0 0.0
    %724 = vmatpush.msra.mxu0 0.0
    %725 = vmatpush.msra.mxu0 0.0
    %726 = vmatpush.msra.mxu0 0.0
    %727 = vmatpush.msra.mxu0 0.0
    %728 = vmatpush.msra.mxu0 0.0
    %729 = vmatpush.msra.mxu0 %v119
    %730 = vmatpush.msra.mxu0 %v117
    %731 = vmatpush.msra.mxu0 %v115
    %732 = vmatpush.msra.mxu0 %v113
    %733 = vmatpush.msra.mxu0 %v111
    %734 = vmatpush.msra.mxu0 %v109
    %735 = vmatpush.msra.mxu0 %v107
    %736 = vmatpush.msra.mxu0 %v105
    %737 = vmatmul.f32.gmra.mxu0 %v719
    %v738 = vpop.f32.mrf.mxu0
    %v739 = vadd.f32 0.0, %v738
    %740 = vdwg.mxu0
    %741 = vmatpush.msra.mxu0 0.0
    %742 = vmatpush.msra.mxu0 0.0
    %743 = vmatpush.msra.mxu0 0.0
    %744 = vmatpush.msra.mxu0 0.0
    %745 = vmatpush.msra.mxu0 0.0
    %746 = vmatpush.msra.mxu0 0.0
    %747 = vmatpush.msra.mxu0 0.0
    %748 = vmatpush.msra.mxu0 0.0
    %749 = vmatpush.msra.mxu0 %v120
    %750 = vmatpush.msra.mxu0 %v118
    %751 = vmatpush.msra.mxu0 %v116
    %752 = vmatpush.msra.mxu0 %v114
    %753 = vmatpush.msra.mxu0 %v112
    %754 = vmatpush.msra.mxu0 %v110
    %755 = vmatpush.msra.mxu0 %v108
    %756 = vmatpush.msra.mxu0 %v106
    %757 = vmatmul.f32.gmra.mxu0 %v719
    %v758 = vpop.f32.mrf.mxu0
    %v759 = vadd.f32 0.0, %v758
    %760 = vdwg.mxu0
    %v761 = vadd.f32 %v716, %v739
    %v762 = vadd.f32 %v717, %v759
    %v763 = vxor.u32 %v761, 2147483648
    %v764 = vxor.u32 %v762, 2147483648
    %v765 = vmul.f32 %v763, 1.442695
    %v766 = vpow.pop %v765
    %v767 = vmul.f32 %v764, 1.442695
    %v768 = vpow.pop %v767
    %v769 = vadd.f32 %v766, 1.0
    %v770 = vadd.f32 %v768, 1.0
    %v771 = vrcp.pop %v769
    %v772 = vmul.f32 %v769, %v771
    %v773 = vsub.f32 1.0, %v772
    %v774 = vmul.f32 %v771, %v773
    %v775 = vadd.f32 %v771, %v774
    %vm776 = vweird.f32 %v769
    %vm777 = vweird.f32 %v771
    %vm778 = vmor %vm776, %vm777
    %v779 = vsel %vm778, %v771, %v775
    %v780 = vand.u32 2147483647, %v769
    %vm781 = vcmp.eq.f32.partialorder %v780, 8.507059e+37
    %v782 = vand.u32 %v769, 2147483648
    %v783 = vor.u32 1.1754944e-38, %v782
    %v784 = vsel %vm781, %v783, %v779
    %v785 = vmul.f32 1.0, %v784
    %v786 = vrcp.pop %v770
    %v787 = vmul.f32 %v770, %v786
    %v788 = vsub.f32 1.0, %v787
    %v789 = vmul.f32 %v786, %v788
    %v790 = vadd.f32 %v786, %v789
    %vm791 = vweird.f32 %v770
    %vm792 = vweird.f32 %v786
    %vm793 = vmor %vm791, %vm792
    %v794 = vsel %vm793, %v786, %v790
    %v795 = vand.u32 2147483647, %v770
    %vm796 = vcmp.eq.f32.partialorder %v795, 8.507059e+37
    %v797 = vand.u32 %v770, 2147483648
    %v798 = vor.u32 1.1754944e-38, %v797
    %v799 = vsel %vm796, %v798, %v794
    %v800 = vmul.f32 1.0, %v799
    %v801 = vtanh.pop %v762
    %v802 = vmul.f32 %v785, %v709
    %804 = vrot.lane.b32.xlu0 %v801, 64
    %v805 = vpop.permute.xlu0 %804
    %v807 = vmul.f32 %v785, %v805
    %809 = vrot.lane.b32.xlu0 %v807, 64
    %v810 = vpop.permute.xlu0 %809
    %v812 = vadd.f32 %v802, %v810
    %v813 = vtanh.pop %v812
    %815 = vrot.lane.b32.xlu0 %v813, 64
    %v816 = vpop.permute.xlu0 %815
    %v818 = vmul.f32 %v800, %v816
    %v819 = vld [vmem:[%s314] sm:$0xff]
    %v820 = vld [vmem:[%s314 + $0x8] sm:$0xff]
    %v822 = vsel %vm511, %v818, 0
    %824 = vmatpush.msra.mxu0 0.0
    %825 = vmatpush.msra.mxu0 0.0
    %826 = vmatpush.msra.mxu0 0.0
    %827 = vmatpush.msra.mxu0 0.0
    %828 = vmatpush.msra.mxu0 0.0
    %829 = vmatpush.msra.mxu0 0.0
    %830 = vmatpush.msra.mxu0 0.0
    %831 = vmatpush.msra.mxu0 0.0
    %832 = vmatpush.msra.mxu0 %v119
    %833 = vmatpush.msra.mxu0 %v117
    %834 = vmatpush.msra.mxu0 %v115
    %835 = vmatpush.msra.mxu0 %v113
    %836 = vmatpush.msra.mxu0 %v111
    %837 = vmatpush.msra.mxu0 %v109
    %838 = vmatpush.msra.mxu0 %v107
    %839 = vmatpush.msra.mxu0 %v105
    %840 = vmatmul.f32.gmra.mxu0 %v822
    %v841 = vpop.f32.mrf.mxu0
    %v842 = vadd.f32 0.0, %v841
    %843 = vdwg.mxu0
    %844 = vmatpush.msra.mxu0 0.0
    %845 = vmatpush.msra.mxu0 0.0
    %846 = vmatpush.msra.mxu0 0.0
    %847 = vmatpush.msra.mxu0 0.0
    %848 = vmatpush.msra.mxu0 0.0
    %849 = vmatpush.msra.mxu0 0.0
    %850 = vmatpush.msra.mxu0 0.0
    %851 = vmatpush.msra.mxu0 0.0
    %852 = vmatpush.msra.mxu0 %v120
    %853 = vmatpush.msra.mxu0 %v118
    %854 = vmatpush.msra.mxu0 %v116
    %855 = vmatpush.msra.mxu0 %v114
    %856 = vmatpush.msra.mxu0 %v112
    %857 = vmatpush.msra.mxu0 %v110
    %858 = vmatpush.msra.mxu0 %v108
    %859 = vmatpush.msra.mxu0 %v106
    %860 = vmatmul.f32.gmra.mxu0 %v822
    %v861 = vpop.f32.mrf.mxu0
    %v862 = vadd.f32 0.0, %v861
    %863 = vdwg.mxu0
    %v864 = vadd.f32 %v819, %v842
    %v865 = vadd.f32 %v820, %v862
    %v866 = vxor.u32 %v864, 2147483648
    %v867 = vxor.u32 %v865, 2147483648
    %v868 = vmul.f32 %v866, 1.442695
    %v869 = vpow.pop %v868
    %v870 = vmul.f32 %v867, 1.442695
    %v871 = vpow.pop %v870
    %v872 = vadd.f32 %v869, 1.0
    %v873 = vadd.f32 %v871, 1.0
    %v874 = vrcp.pop %v872
    %v875 = vmul.f32 %v872, %v874
    %v876 = vsub.f32 1.0, %v875
    %v877 = vmul.f32 %v874, %v876
    %v878 = vadd.f32 %v874, %v877
    %vm879 = vweird.f32 %v872
    %vm880 = vweird.f32 %v874
    %vm881 = vmor %vm879, %vm880
    %v882 = vsel %vm881, %v874, %v878
    %v883 = vand.u32 2147483647, %v872
    %vm884 = vcmp.eq.f32.partialorder %v883, 8.507059e+37
    %v885 = vand.u32 %v872, 2147483648
    %v886 = vor.u32 1.1754944e-38, %v885
    %v887 = vsel %vm884, %v886, %v882
    %v888 = vmul.f32 1.0, %v887
    %v889 = vrcp.pop %v873
    %v890 = vmul.f32 %v873, %v889
    %v891 = vsub.f32 1.0, %v890
    %v892 = vmul.f32 %v889, %v891
    %v893 = vadd.f32 %v889, %v892
    %vm894 = vweird.f32 %v873
    %vm895 = vweird.f32 %v889
    %vm896 = vmor %vm894, %vm895
    %v897 = vsel %vm896, %v889, %v893
    %v898 = vand.u32 2147483647, %v873
    %vm899 = vcmp.eq.f32.partialorder %v898, 8.507059e+37
    %v900 = vand.u32 %v873, 2147483648
    %v901 = vor.u32 1.1754944e-38, %v900
    %v902 = vsel %vm899, %v901, %v897
    %v903 = vmul.f32 1.0, %v902
    %v904 = vtanh.pop %v865
    %v905 = vmul.f32 %v888, %v812
    %907 = vrot.lane.b32.xlu0 %v904, 64
    %v908 = vpop.permute.xlu0 %907
    %v910 = vmul.f32 %v888, %v908
    %912 = vrot.lane.b32.xlu0 %v910, 64
    %v913 = vpop.permute.xlu0 %912
    %v915 = vadd.f32 %v905, %v913
    %v916 = vtanh.pop %v915
    %918 = vrot.lane.b32.xlu0 %v916, 64
    %v919 = vpop.permute.xlu0 %918
    %v921 = vmul.f32 %v903, %v919
    %v922 = vld [vmem:[%s362] sm:$0xff]
    %v923 = vld [vmem:[%s362 + $0x8] sm:$0xff]
    %v925 = vsel %vm511, %v921, 0
    %927 = vmatpush.msra.mxu0 0.0
    %928 = vmatpush.msra.mxu0 0.0
    %929 = vmatpush.msra.mxu0 0.0
    %930 = vmatpush.msra.mxu0 0.0
    %931 = vmatpush.msra.mxu0 0.0
    %932 = vmatpush.msra.mxu0 0.0
    %933 = vmatpush.msra.mxu0 0.0
    %934 = vmatpush.msra.mxu0 0.0
    %935 = vmatpush.msra.mxu0 %v119
    %936 = vmatpush.msra.mxu0 %v117
    %937 = vmatpush.msra.mxu0 %v115
    %938 = vmatpush.msra.mxu0 %v113
    %939 = vmatpush.msra.mxu0 %v111
    %940 = vmatpush.msra.mxu0 %v109
    %941 = vmatpush.msra.mxu0 %v107
    %942 = vmatpush.msra.mxu0 %v105
    %943 = vmatmul.f32.gmra.mxu0 %v925
    %v944 = vpop.f32.mrf.mxu0
    %v945 = vadd.f32 0.0, %v944
    %946 = vdwg.mxu0
    %947 = vmatpush.msra.mxu0 0.0
    %948 = vmatpush.msra.mxu0 0.0
    %949 = vmatpush.msra.mxu0 0.0
    %950 = vmatpush.msra.mxu0 0.0
    %951 = vmatpush.msra.mxu0 0.0
    %952 = vmatpush.msra.mxu0 0.0
    %953 = vmatpush.msra.mxu0 0.0
    %954 = vmatpush.msra.mxu0 0.0
    %955 = vmatpush.msra.mxu0 %v120
    %956 = vmatpush.msra.mxu0 %v118
    %957 = vmatpush.msra.mxu0 %v116
    %958 = vmatpush.msra.mxu0 %v114
    %959 = vmatpush.msra.mxu0 %v112
    %960 = vmatpush.msra.mxu0 %v110
    %961 = vmatpush.msra.mxu0 %v108
    %962 = vmatpush.msra.mxu0 %v106
    %963 = vmatmul.f32.gmra.mxu0 %v925
    %v964 = vpop.f32.mrf.mxu0
    %v965 = vadd.f32 0.0, %v964
    %966 = vdwg.mxu0
    %v967 = vadd.f32 %v922, %v945
    %v968 = vadd.f32 %v923, %v965
    %v969 = vxor.u32 %v967, 2147483648
    %v970 = vxor.u32 %v968, 2147483648
    %v971 = vmul.f32 %v969, 1.442695
    %v972 = vpow.pop %v971
    %v973 = vmul.f32 %v970, 1.442695
    %v974 = vpow.pop %v973
    %v975 = vadd.f32 %v972, 1.0
    %v976 = vadd.f32 %v974, 1.0
    %v977 = vrcp.pop %v975
    %v978 = vmul.f32 %v975, %v977
    %v979 = vsub.f32 1.0, %v978
    %v980 = vmul.f32 %v977, %v979
    %v981 = vadd.f32 %v977, %v980
    %vm982 = vweird.f32 %v975
    %vm983 = vweird.f32 %v977
    %vm984 = vmor %vm982, %vm983
    %v985 = vsel %vm984, %v977, %v981
    %v986 = vand.u32 2147483647, %v975
    %vm987 = vcmp.eq.f32.partialorder %v986, 8.507059e+37
    %v988 = vand.u32 %v975, 2147483648
    %v989 = vor.u32 1.1754944e-38, %v988
    %v990 = vsel %vm987, %v989, %v985
    %v991 = vmul.f32 1.0, %v990
    %v992 = vrcp.pop %v976
    %v993 = vmul.f32 %v976, %v992
    %v994 = vsub.f32 1.0, %v993
    %v995 = vmul.f32 %v992, %v994
    %v996 = vadd.f32 %v992, %v995
    %vm997 = vweird.f32 %v976
    %vm998 = vweird.f32 %v992
    %vm999 = vmor %vm997, %vm998
    %v1000 = vsel %vm999, %v992, %v996
    %v1001 = vand.u32 2147483647, %v976
    %vm1002 = vcmp.eq.f32.partialorder %v1001, 8.507059e+37
    %v1003 = vand.u32 %v976, 2147483648
    %v1004 = vor.u32 1.1754944e-38, %v1003
    %v1005 = vsel %vm1002, %v1004, %v1000
    %v1006 = vmul.f32 1.0, %v1005
    %v1007 = vtanh.pop %v968
    %v1008 = vmul.f32 %v991, %v915
    %1010 = vrot.lane.b32.xlu0 %v1007, 64
    %v1011 = vpop.permute.xlu0 %1010
    %v1013 = vmul.f32 %v991, %v1011
    %1015 = vrot.lane.b32.xlu0 %v1013, 64
    %v1016 = vpop.permute.xlu0 %1015
    %v1018 = vadd.f32 %v1008, %v1016
    %v1019 = vtanh.pop %v1018
    %1021 = vrot.lane.b32.xlu0 %v1019, 64
    %v1022 = vpop.permute.xlu0 %1021
    %v1024 = vmul.f32 %v1006, %v1022
    %v1025 = vld [vmem:[%s410] sm:$0xff]
    %v1026 = vld [vmem:[%s410 + $0x8] sm:$0xff]
    %v1028 = vsel %vm511, %v1024, 0
    %1030 = vmatpush.msra.mxu0 0.0
    %1031 = vmatpush.msra.mxu0 0.0
    %1032 = vmatpush.msra.mxu0 0.0
    %1033 = vmatpush.msra.mxu0 0.0
    %1034 = vmatpush.msra.mxu0 0.0
    %1035 = vmatpush.msra.mxu0 0.0
    %1036 = vmatpush.msra.mxu0 0.0
    %1037 = vmatpush.msra.mxu0 0.0
    %1038 = vmatpush.msra.mxu0 %v119
    %1039 = vmatpush.msra.mxu0 %v117
    %1040 = vmatpush.msra.mxu0 %v115
    %1041 = vmatpush.msra.mxu0 %v113
    %1042 = vmatpush.msra.mxu0 %v111
    %1043 = vmatpush.msra.mxu0 %v109
    %1044 = vmatpush.msra.mxu0 %v107
    %1045 = vmatpush.msra.mxu0 %v105
    %1046 = vmatmul.f32.gmra.mxu0 %v1028
    %v1047 = vpop.f32.mrf.mxu0
    %v1048 = vadd.f32 0.0, %v1047
    %1049 = vdwg.mxu0
    %1050 = vmatpush.msra.mxu0 0.0
    %1051 = vmatpush.msra.mxu0 0.0
    %1052 = vmatpush.msra.mxu0 0.0
    %1053 = vmatpush.msra.mxu0 0.0
    %1054 = vmatpush.msra.mxu0 0.0
    %1055 = vmatpush.msra.mxu0 0.0
    %1056 = vmatpush.msra.mxu0 0.0
    %1057 = vmatpush.msra.mxu0 0.0
    %1058 = vmatpush.msra.mxu0 %v120
    %1059 = vmatpush.msra.mxu0 %v118
    %1060 = vmatpush.msra.mxu0 %v116
    %1061 = vmatpush.msra.mxu0 %v114
    %1062 = vmatpush.msra.mxu0 %v112
    %1063 = vmatpush.msra.mxu0 %v110
    %1064 = vmatpush.msra.mxu0 %v108
    %1065 = vmatpush.msra.mxu0 %v106
    %1066 = vmatmul.f32.gmra.mxu0 %v1028
    %v1067 = vpop.f32.mrf.mxu0
    %v1068 = vadd.f32 0.0, %v1067
    %1069 = vdwg.mxu0
    %v1070 = vadd.f32 %v1025, %v1048
    %v1071 = vadd.f32 %v1026, %v1068
    %v1072 = vxor.u32 %v1070, 2147483648
    %v1073 = vxor.u32 %v1071, 2147483648
    %v1074 = vmul.f32 %v1072, 1.442695
    %v1075 = vpow.pop %v1074
    %v1076 = vmul.f32 %v1073, 1.442695
    %v1077 = vpow.pop %v1076
    %v1078 = vadd.f32 %v1075, 1.0
    %v1079 = vadd.f32 %v1077, 1.0
    %v1080 = vrcp.pop %v1078
    %v1081 = vmul.f32 %v1078, %v1080
    %v1082 = vsub.f32 1.0, %v1081
    %v1083 = vmul.f32 %v1080, %v1082
    %v1084 = vadd.f32 %v1080, %v1083
    %vm1085 = vweird.f32 %v1078
    %vm1086 = vweird.f32 %v1080
    %vm1087 = vmor %vm1085, %vm1086
    %v1088 = vsel %vm1087, %v1080, %v1084
    %v1089 = vand.u32 2147483647, %v1078
    %vm1090 = vcmp.eq.f32.partialorder %v1089, 8.507059e+37
    %v1091 = vand.u32 %v1078, 2147483648
    %v1092 = vor.u32 1.1754944e-38, %v1091
    %v1093 = vsel %vm1090, %v1092, %v1088
    %v1094 = vmul.f32 1.0, %v1093
    %v1095 = vrcp.pop %v1079
    %v1096 = vmul.f32 %v1079, %v1095
    %v1097 = vsub.f32 1.0, %v1096
    %v1098 = vmul.f32 %v1095, %v1097
    %v1099 = vadd.f32 %v1095, %v1098
    %vm1100 = vweird.f32 %v1079
    %vm1101 = vweird.f32 %v1095
    %vm1102 = vmor %vm1100, %vm1101
    %v1103 = vsel %vm1102, %v1095, %v1099
    %v1104 = vand.u32 2147483647, %v1079
    %vm1105 = vcmp.eq.f32.partialorder %v1104, 8.507059e+37
    %v1106 = vand.u32 %v1079, 2147483648
    %v1107 = vor.u32 1.1754944e-38, %v1106
    %v1108 = vsel %vm1105, %v1107, %v1103
    %v1109 = vmul.f32 1.0, %v1108
    %v1110 = vtanh.pop %v1071
    %v1111 = vmul.f32 %v1094, %v1018
    %1113 = vrot.lane.b32.xlu0 %v1110, 64
    %v1114 = vpop.permute.xlu0 %1113
    %v1116 = vmul.f32 %v1094, %v1114
    %1118 = vrot.lane.b32.xlu0 %v1116, 64
    %v1119 = vpop.permute.xlu0 %1118
    %v1121 = vadd.f32 %v1111, %v1119
    %v1122 = vtanh.pop %v1121
    %1124 = vrot.lane.b32.xlu0 %v1122, 64
    %v1125 = vpop.permute.xlu0 %1124
    %v1127 = vmul.f32 %v1109, %v1125
    %v1128 = vld [vmem:[%s458] sm:$0xff]
    %v1129 = vld [vmem:[%s458 + $0x8] sm:$0xff]
    %v1131 = vsel %vm511, %v1127, 0
    %1133 = vmatpush.msra.mxu0 0.0
    %1134 = vmatpush.msra.mxu0 0.0
    %1135 = vmatpush.msra.mxu0 0.0
    %1136 = vmatpush.msra.mxu0 0.0
    %1137 = vmatpush.msra.mxu0 0.0
    %1138 = vmatpush.msra.mxu0 0.0
    %1139 = vmatpush.msra.mxu0 0.0
    %1140 = vmatpush.msra.mxu0 0.0
    %1141 = vmatpush.msra.mxu0 %v119
    %1142 = vmatpush.msra.mxu0 %v117
    %1143 = vmatpush.msra.mxu0 %v115
    %1144 = vmatpush.msra.mxu0 %v113
    %1145 = vmatpush.msra.mxu0 %v111
    %1146 = vmatpush.msra.mxu0 %v109
    %1147 = vmatpush.msra.mxu0 %v107
    %1148 = vmatpush.msra.mxu0 %v105
    %1149 = vmatmul.f32.gmra.mxu0 %v1131
    %v1150 = vpop.f32.mrf.mxu0
    %v1151 = vadd.f32 0.0, %v1150
    %1152 = vdwg.mxu0
    %1153 = vmatpush.msra.mxu0 0.0
    %1154 = vmatpush.msra.mxu0 0.0
    %1155 = vmatpush.msra.mxu0 0.0
    %1156 = vmatpush.msra.mxu0 0.0
    %1157 = vmatpush.msra.mxu0 0.0
    %1158 = vmatpush.msra.mxu0 0.0
    %1159 = vmatpush.msra.mxu0 0.0
    %1160 = vmatpush.msra.mxu0 0.0
    %1161 = vmatpush.msra.mxu0 %v120
    %1162 = vmatpush.msra.mxu0 %v118
    %1163 = vmatpush.msra.mxu0 %v116
    %1164 = vmatpush.msra.mxu0 %v114
    %1165 = vmatpush.msra.mxu0 %v112
    %1166 = vmatpush.msra.mxu0 %v110
    %1167 = vmatpush.msra.mxu0 %v108
    %1168 = vmatpush.msra.mxu0 %v106
    %1169 = vmatmul.f32.gmra.mxu0 %v1131
    %v1170 = vpop.f32.mrf.mxu0
    %v1171 = vadd.f32 0.0, %v1170
    %1172 = vdwg.mxu0
    %v1173 = vadd.f32 %v1128, %v1151
    %v1174 = vadd.f32 %v1129, %v1171
    %v1175 = vxor.u32 %v1173, 2147483648
    %v1176 = vxor.u32 %v1174, 2147483648
    %v1177 = vmul.f32 %v1175, 1.442695
    %v1178 = vpow.pop %v1177
    %v1179 = vmul.f32 %v1176, 1.442695
    %v1180 = vpow.pop %v1179
    %v1181 = vadd.f32 %v1178, 1.0
    %v1182 = vadd.f32 %v1180, 1.0
    %v1183 = vrcp.pop %v1181
    %v1184 = vmul.f32 %v1181, %v1183
    %v1185 = vsub.f32 1.0, %v1184
    %v1186 = vmul.f32 %v1183, %v1185
    %v1187 = vadd.f32 %v1183, %v1186
    %vm1188 = vweird.f32 %v1181
    %vm1189 = vweird.f32 %v1183
    %vm1190 = vmor %vm1188, %vm1189
    %v1191 = vsel %vm1190, %v1183, %v1187
    %v1192 = vand.u32 2147483647, %v1181
    %vm1193 = vcmp.eq.f32.partialorder %v1192, 8.507059e+37
    %v1194 = vand.u32 %v1181, 2147483648
    %v1195 = vor.u32 1.1754944e-38, %v1194
    %v1196 = vsel %vm1193, %v1195, %v1191
    %v1197 = vmul.f32 1.0, %v1196
    %v1198 = vrcp.pop %v1182
    %v1199 = vmul.f32 %v1182, %v1198
    %v1200 = vsub.f32 1.0, %v1199
    %v1201 = vmul.f32 %v1198, %v1200
    %v1202 = vadd.f32 %v1198, %v1201
    %vm1203 = vweird.f32 %v1182
    %vm1204 = vweird.f32 %v1198
    %vm1205 = vmor %vm1203, %vm1204
    %v1206 = vsel %vm1205, %v1198, %v1202
    %v1207 = vand.u32 2147483647, %v1182
    %vm1208 = vcmp.eq.f32.partialorder %v1207, 8.507059e+37
    %v1209 = vand.u32 %v1182, 2147483648
    %v1210 = vor.u32 1.1754944e-38, %v1209
    %v1211 = vsel %vm1208, %v1210, %v1206
    %v1212 = vmul.f32 1.0, %v1211
    %v1213 = vtanh.pop %v1174
    %v1214 = vmul.f32 %v1197, %v1121
    %1216 = vrot.lane.b32.xlu0 %v1213, 64
    %v1217 = vpop.permute.xlu0 %1216
    %v1219 = vmul.f32 %v1197, %v1217
    %1221 = vrot.lane.b32.xlu0 %v1219, 64
    %v1222 = vpop.permute.xlu0 %1221
    %v1224 = vadd.f32 %v1214, %v1222
    %v1225 = vtanh.pop %v1224
    %1227 = vrot.lane.b32.xlu0 %v1225, 64
    %v1228 = vpop.permute.xlu0 %1227
    %v1230 = vmul.f32 %v1212, %v1228
    %v1231 = vld [vmem:[%s506] sm:$0xff]
    %v1232 = vld [vmem:[%s506 + $0x8] sm:$0xff]
    %v1234 = vsel %vm511, %v1230, 0
    %1236 = vmatpush.msra.mxu0 0.0
    %1237 = vmatpush.msra.mxu0 0.0
    %1238 = vmatpush.msra.mxu0 0.0
    %1239 = vmatpush.msra.mxu0 0.0
    %1240 = vmatpush.msra.mxu0 0.0
    %1241 = vmatpush.msra.mxu0 0.0
    %1242 = vmatpush.msra.mxu0 0.0
    %1243 = vmatpush.msra.mxu0 0.0
    %1244 = vmatpush.msra.mxu0 %v119
    %1245 = vmatpush.msra.mxu0 %v117
    %1246 = vmatpush.msra.mxu0 %v115
    %1247 = vmatpush.msra.mxu0 %v113
    %1248 = vmatpush.msra.mxu0 %v111
    %1249 = vmatpush.msra.mxu0 %v109
    %1250 = vmatpush.msra.mxu0 %v107
    %1251 = vmatpush.msra.mxu0 %v105
    %1252 = vmatmul.f32.gmra.mxu0 %v1234
    %v1253 = vpop.f32.mrf.mxu0
    %v1254 = vadd.f32 0.0, %v1253
    %1255 = vdwg.mxu0
    %1256 = vmatpush.msra.mxu0 0.0
    %1257 = vmatpush.msra.mxu0 0.0
    %1258 = vmatpush.msra.mxu0 0.0
    %1259 = vmatpush.msra.mxu0 0.0
    %1260 = vmatpush.msra.mxu0 0.0
    %1261 = vmatpush.msra.mxu0 0.0
    %1262 = vmatpush.msra.mxu0 0.0
    %1263 = vmatpush.msra.mxu0 0.0
    %1264 = vmatpush.msra.mxu0 %v120
    %1265 = vmatpush.msra.mxu0 %v118
    %1266 = vmatpush.msra.mxu0 %v116
    %1267 = vmatpush.msra.mxu0 %v114
    %1268 = vmatpush.msra.mxu0 %v112
    %1269 = vmatpush.msra.mxu0 %v110
    %1270 = vmatpush.msra.mxu0 %v108
    %1271 = vmatpush.msra.mxu0 %v106
    %1272 = vmatmul.f32.gmra.mxu0 %v1234
    %v1273 = vpop.f32.mrf.mxu0
    %v1274 = vadd.f32 0.0, %v1273
    %1275 = vdwg.mxu0
    %v1276 = vadd.f32 %v1231, %v1254
    %v1277 = vadd.f32 %v1232, %v1274
    %v1278 = vxor.u32 %v1276, 2147483648
    %v1279 = vxor.u32 %v1277, 2147483648
    %v1280 = vmul.f32 %v1278, 1.442695
    %v1281 = vpow.pop %v1280
    %v1282 = vmul.f32 %v1279, 1.442695
    %v1283 = vpow.pop %v1282
    %v1284 = vadd.f32 %v1281, 1.0
    %v1285 = vadd.f32 %v1283, 1.0
    %v1286 = vrcp.pop %v1284
    %v1287 = vmul.f32 %v1284, %v1286
    %v1288 = vsub.f32 1.0, %v1287
    %v1289 = vmul.f32 %v1286, %v1288
    %v1290 = vadd.f32 %v1286, %v1289
    %vm1291 = vweird.f32 %v1284
    %vm1292 = vweird.f32 %v1286
    %vm1293 = vmor %vm1291, %vm1292
    %v1294 = vsel %vm1293, %v1286, %v1290
    %v1295 = vand.u32 2147483647, %v1284
    %vm1296 = vcmp.eq.f32.partialorder %v1295, 8.507059e+37
    %v1297 = vand.u32 %v1284, 2147483648
    %v1298 = vor.u32 1.1754944e-38, %v1297
    %v1299 = vsel %vm1296, %v1298, %v1294
    %v1300 = vmul.f32 1.0, %v1299
    %v1301 = vrcp.pop %v1285
    %v1302 = vmul.f32 %v1285, %v1301
    %v1303 = vsub.f32 1.0, %v1302
    %v1304 = vmul.f32 %v1301, %v1303
    %v1305 = vadd.f32 %v1301, %v1304
    %vm1306 = vweird.f32 %v1285
    %vm1307 = vweird.f32 %v1301
    %vm1308 = vmor %vm1306, %vm1307
    %v1309 = vsel %vm1308, %v1301, %v1305
    %v1310 = vand.u32 2147483647, %v1285
    %vm1311 = vcmp.eq.f32.partialorder %v1310, 8.507059e+37
    %v1312 = vand.u32 %v1285, 2147483648
    %v1313 = vor.u32 1.1754944e-38, %v1312
    %v1314 = vsel %vm1311, %v1313, %v1309
    %v1315 = vmul.f32 1.0, %v1314
    %v1316 = vtanh.pop %v1277
    %v1317 = vmul.f32 %v1300, %v1224
    %1319 = vrot.lane.b32.xlu0 %v1316, 64
    %v1320 = vpop.permute.xlu0 %1319
    %v1322 = vmul.f32 %v1300, %v1320
    %1324 = vrot.lane.b32.xlu0 %v1322, 64
    %v1325 = vpop.permute.xlu0 %1324
    %v1327 = vadd.f32 %v1317, %v1325
    %v1328 = vtanh.pop %v1327
    %1330 = vrot.lane.b32.xlu0 %v1328, 64
    %v1331 = vpop.permute.xlu0 %1330
    %v1333 = vmul.f32 %v1315, %v1331
    %v1334 = vld [vmem:[#allocation11] sm:$0xff]
    %v1335 = vld [vmem:[#allocation11 + $0x8] sm:$0xff]
    %v1336 = vld [vmem:[#allocation11 + $0x10] sm:$0xff]
    %v1337 = vld [vmem:[#allocation11 + $0x18] sm:$0xff]
    %v1338 = vld [vmem:[#allocation11 + $0x20] sm:$0xff]
    %v1339 = vld [vmem:[#allocation11 + $0x28] sm:$0xff]
    %v1340 = vld [vmem:[#allocation11 + $0x30] sm:$0xff]
    %v1341 = vld [vmem:[#allocation11 + $0x38] sm:$0xff]
    %v1342 = vld [vmem:[%s5] sm:$0x1]
    %v1344 = vperm.slane %v1342, 0
    %v1347 = vsel %vm511, %v1333, 0
    %1349 = vmatpush.msra.mxu0 0.0
    %1350 = vmatpush.msra.mxu0 0.0
    %1351 = vmatpush.msra.mxu0 0.0
    %1352 = vmatpush.msra.mxu0 0.0
    %1353 = vmatpush.msra.mxu0 0.0
    %1354 = vmatpush.msra.mxu0 0.0
    %1355 = vmatpush.msra.mxu0 0.0
    %1356 = vmatpush.msra.mxu0 0.0
    %1357 = vmatpush.msra.mxu0 %v1341
    %1358 = vmatpush.msra.mxu0 %v1340
    %1359 = vmatpush.msra.mxu0 %v1339
    %1360 = vmatpush.msra.mxu0 %v1338
    %1361 = vmatpush.msra.mxu0 %v1337
    %1362 = vmatpush.msra.mxu0 %v1336
    %1363 = vmatpush.msra.mxu0 %v1335
    %1364 = vmatpush.msra.mxu0 %v1334
    %1365 = vmatmul.f32.gmra.mxu0 %v1347
    %v1366 = vpop.f32.mrf.mxu0
    %v1367 = vadd.f32 %v1344, %v1366
    %1368 = vdwg.mxu0
    %1369 = vst [vmem:[#allocation12] sm:$0xff] %v1367
    // Predicated region
    $region46: #{tpu_custom_call.1} parent=1 // pred_check
      _
    $region47: #{tpu_custom_call.1} parent=1 // pred_check_branch
      %1371 = sbr.rel (0) target = $region49
    $region48: #{tpu_custom_call.1} parent=1 // pred_region
      %1373 = vsyncadd [#allocation5], 0
      %s1375 = sshll.u32 [#allocation12], 4
      %s1376 = int_to_ptr.vmem [resolvable:$true] %s1375
      %s1377 = sshll.u32 %s6, 4
      %s1378 = int_to_ptr.hbm [resolvable:$true] %s1377
      %1380 = dma.vmem_to_hbm [thread:$0]  %s1376, 128, %s1378, [#allocation5]
    $region49: #{tpu_custom_call.1} parent=1 // pred_fallthru
      _
    // Predicated region
    $region50: #{tpu_custom_call.1} parent=1 // pred_check
      _
    $region51: #{tpu_custom_call.1} parent=1 // pred_check_branch
      %1382 = sbr.rel (0) target = $region53
    $region52: #{tpu_custom_call.1} parent=1 // pred_region
      %1384 = dma.done [#allocation5], 128
    $region53: #{tpu_custom_call.1} parent=1 // pred_fallthru
      _
    %1385 = vsyncpa [#allocation4], 1
    %1386 = vsyncpa [#allocation7], 1
    %1387 = vsyncpa [#allocation10], 1
    %1388 = vsyncpa [#allocation5], 1

</llo_original>
